<compile_context>
chip_gen: v7x
topology: tpu7x:2x2x1
jax: 0.10.0
libtpu: 0.0.40
codegen_flags: <defaults>
</compile_context>

<pallas_src>
import functools

import jax
import jax.numpy as jnp
from jax.experimental import pallas as pl
from jax.experimental.pallas import tpu as pltpu

_EPS = 1e-6
_MIB = 1 << 20


# --------------------------------------------------------------------------
# Single-buffering probe for constant (weight) blocks.
# --------------------------------------------------------------------------
def _probe_copy_kernel(x_ref, o_ref):
    o_ref[...] = x_ref[...]


@functools.lru_cache(maxsize=None)
def _buffered_one_supported():
    """Probe whether pipeline_mode=pl.Buffered(1) (single-buffered, constant
    index-map blocks) lowers on this JAX/Mosaic version; otherwise fall back
    to the default double-buffered specs."""
    try:
        spec = pl.BlockSpec((8, 128), lambda i: (0, 0),
                            pipeline_mode=pl.Buffered(1))
        x = jnp.zeros((8, 128), jnp.float32)
        out = pl.pallas_call(
            _probe_copy_kernel,
            out_shape=jax.ShapeDtypeStruct((8, 128), jnp.float32),
            grid=(1,),
            in_specs=[spec],
            out_specs=pl.BlockSpec((8, 128), lambda i: (0, 0)),
        )(x)
        jax.block_until_ready(out)
        return True
    except Exception:
        return False


def _const_spec(shape):
    """BlockSpec for a grid-invariant (weight / bias) input."""
    n = len(shape)
    idx = lambda i, t, _n=n: (0,) * _n
    if _buffered_one_supported():
        # Constant index map => the block never changes; single-buffer it so
        # the (large, bf16) weights are not held twice in VMEM.
        return pl.BlockSpec(shape, idx, pipeline_mode=pl.Buffered(1))
    return pl.BlockSpec(shape, idx)


# --------------------------------------------------------------------------
# Kernel
# --------------------------------------------------------------------------
def _make_gcnn_kernel(d_actual, d_pad, n_left, n_state, t_chunk, has_left,
                      mm_dtype):
    f32 = jnp.float32
    L, S = n_left, n_state
    T = L + S

    def kernel(*refs):
        if has_left:
            (state_ref, left_ref, adj_ref,
             w1_ref, b1_ref, wqk_ref, bqk_ref, wv_ref, bv_ref,
             wo_ref, bo_ref, gamma_ref, beta_ref, w2_ref, b2_ref,
             out_ref, x1_scr, x1s_scr, z_scr) = refs
        else:
            (state_ref, adj_ref,
             w1_ref, b1_ref, wqk_ref, bqk_ref, wv_ref, bv_ref,
             wo_ref, bo_ref, gamma_ref, beta_ref, w2_ref, b2_ref,
             out_ref, x1_scr, x1s_scr, z_scr) = refs
            left_ref = None

        BB = state_ref.shape[0]
        Dp = d_pad
        t = pl.program_id(1)
        n_t = pl.num_programs(1)

        # ---- first contraction chunk: compute x1 = linear(cat([left, state]))
        # once per batch block and stash it.  bf16 rows 0..T go to x1_scr for
        # the adjacency bmm (in-kernel "concat" = two stores); the f32 state
        # rows go to x1s_scr for layernorm + residual.  The state/left/weight
        # blocks have constant index maps along the chunk axis, so they stay
        # resident in VMEM across chunks (no re-DMA).
        @pl.when(t == 0)
        def _():
            w1 = w1_ref[...]
            b1 = b1_ref[...]
            xs = state_ref[...].astype(mm_dtype).reshape(BB * S, Dp)
            x1_s = jnp.dot(xs, w1, preferred_element_type=f32) + b1
            x1s_scr[...] = x1_s.reshape(BB, S, Dp)
            x1_scr[:, pl.ds(L, S), :] = x1_s.reshape(BB, S, Dp).astype(mm_dtype)
            if has_left:
                xl = left_ref[...].astype(mm_dtype).reshape(BB * L, Dp)
                x1_l = jnp.dot(xl, w1, preferred_element_type=f32) + b1
                x1_scr[:, pl.ds(0, L), :] = (
                    x1_l.reshape(BB, L, Dp).astype(mm_dtype))
            z_scr[...] = jnp.zeros_like(z_scr)

        # ---- adjacency contraction, one T-chunk per grid step:
        #      z[:, state rows] += adj[:, L:, chunk] @ x1[chunk]
        # TODO(synk): pad L/S to multiples of 8 (sublane) upstream to avoid
        # masked row slices when they are unaligned.
        adj_rows = adj_ref[:, pl.ds(L, S), :].astype(mm_dtype)     # (BB, S, TC)
        if t_chunk == T:
            x1_chunk = x1_scr[...]                                 # (BB, T, Dp)
        else:
            start = pl.multiple_of(t * t_chunk, t_chunk)
            x1_chunk = x1_scr[:, pl.ds(start, t_chunk), :]
        z_scr[...] += jnp.einsum("bst,btd->bsd", adj_rows, x1_chunk,
                                 preferred_element_type=f32)

        # ---- last chunk: layernorm + gated combination + residual + second
        # linear, for the state rows only (the module's trailing
        # `[:, left.size(1):, :]` slice is folded in here).
        @pl.when(t == n_t - 1)
        def _():
            x1_s = x1s_scr[...].reshape(BB * S, Dp)
            z = z_scr[...].reshape(BB * S, Dp)

            # LayerNorm, annotated-transformer style: unbiased std (D-1), eps
            # added to the std.  Padded lanes are masked out of the statistics
            # and stay exactly 0 afterwards (gamma/beta/bias padding is 0).
            mean = jnp.sum(x1_s, axis=-1, keepdims=True) * (1.0 / d_actual)
            diff = x1_s - mean
            if d_pad != d_actual:
                lane = jax.lax.broadcasted_iota(jnp.int32, (1, d_pad), 1)
                diff = jnp.where(lane < d_actual, diff, 0.0)
            var = jnp.sum(diff * diff, axis=-1, keepdims=True) * (
                1.0 / (d_actual - 1))
            inv_std = 1.0 / (jnp.sqrt(var) + _EPS)     # exact; negligible cost
            y = gamma_ref[...] * (diff * inv_std) + beta_ref[...]

            # MultiHeadedCombination(q=y, k=y, v=z): fused Q|K projection, an
            # element-wise softmax gate over the three streams, output linear.
            # TODO(synk): for very large Dp, process this gate + wo matmul in
            # lane chunks to shrink the f32 live set (v7x VMEM).
            qk = jnp.dot(y.astype(mm_dtype), wqk_ref[...],
                         preferred_element_type=f32) + bqk_ref[...]
            q = qk[:, :Dp]
            k = qk[:, Dp:]
            v = jnp.dot(z.astype(mm_dtype), wv_ref[...],
                        preferred_element_type=f32) + bv_ref[...]
            m = jnp.maximum(jnp.maximum(q, k), v)
            eq = jnp.exp(q - m)
            ek = jnp.exp(k - m)
            ev = jnp.exp(v - m)
            comb = (eq * q + ek * k + ev * v) * pl.reciprocal(
                eq + ek + ev, approx=True)
            com_out = jnp.dot(comb.astype(mm_dtype), wo_ref[...],
                              preferred_element_type=f32) + bo_ref[...]

            x2 = x1_s + com_out    # residual; dropout = identity at inference

            out = jnp.dot(x2.astype(mm_dtype), w2_ref[...],
                          preferred_element_type=f32) + b2_ref[...]
            out_ref[...] = out.reshape(BB, S, Dp).astype(out_ref.dtype)

    return kernel


# --------------------------------------------------------------------------
# Tiling heuristics
# --------------------------------------------------------------------------
def _vmem_bytes_estimate(bb, S, L, T, d_pad, t_chunk, mm_bytes, out_bytes):
    rows = bb * S
    blocks = 2 * rows * d_pad * 4               # state input (f32, 2-deep)
    blocks += 2 * bb * L * d_pad * 4            # left input
    blocks += 2 * bb * T * t_chunk * 4          # adjacency input
    blocks += 2 * rows * d_pad * out_bytes      # output
    weights = 6 * d_pad * d_pad * mm_bytes + 8 * d_pad * 4   # single-buffered
    scratch = bb * T * d_pad * mm_bytes + 2 * rows * d_pad * 4
    live = 12 * rows * d_pad * 4                # f32 gate intermediates / spill
    return blocks + weights + scratch + live


def _pick_t_chunk(T):
    """Tile the adjacency contraction only when T is large AND cleanly
    divisible into lane-aligned chunks (the (8,128) rule requires the chunk to
    be a multiple of 128 or the full dim)."""
    if T > 1024 and T % 128 == 0:
        for c in (512, 256, 128):
            if T % c == 0:
                return c
    return T


def _pick_block_b(B, S, L, T, d_pad, t_chunk, mm_bytes, out_bytes,
                  vmem_budget=44 * _MIB):
    """Batch elements per grid step, sized by the matmul M dimension (BB*S):
    aim for >=256 rows (MXU-friendly on 256-wide v6e/v7x) within a VMEM
    budget, and keep >= 2 grid steps when that does not starve the MXU (v7x
    has 2 TensorCores on the 'parallel' axis)."""
    divisors = [d for d in range(1, B + 1) if B % d == 0]
    ok = [d for d in divisors
          if _vmem_bytes_estimate(d, S, L, T, d_pad, t_chunk, mm_bytes,
                                  out_bytes) <= vmem_budget]
    if not ok:
        return 1
    bb = next((d for d in ok if d * S >= 256), ok[-1])
    if B // bb < 2:
        alt = [d for d in ok if B // d >= 2]
        if alt and alt[-1] * S >= 128:
            bb = alt[-1]
    return bb


# --------------------------------------------------------------------------
# Wrapper
# --------------------------------------------------------------------------
def prepare_params(params, d_model, mm_dtype=jnp.bfloat16):
    """Pad weights to the lane-dense width, fuse the Q|K projections and cast
    to the matmul dtype.  Do this ONCE (model-load time), not per call."""
    d_pad = ((d_model + 127) // 128) * 128

    def pad_w(w):
        return jnp.pad(w, ((0, d_pad - w.shape[0]),
                           (0, d_pad - w.shape[1]))).astype(mm_dtype)

    def pad_v(v):
        return jnp.pad(v, ((0, 0), (0, d_pad - v.shape[1]))).astype(jnp.float32)

    p = params
    return (
        pad_w(p["w1"]), pad_v(p["b1"]),
        jnp.concatenate([pad_w(p["wq"]), pad_w(p["wk"])], axis=1),   # fused Q|K
        jnp.concatenate([pad_v(p["bq"]), pad_v(p["bk"])], axis=1),
        pad_w(p["wv"]), pad_v(p["bv"]),
        pad_w(p["wo"]), pad_v(p["bo"]),
        pad_v(p["gamma"]), pad_v(p["beta"]),
        pad_w(p["w2"]), pad_v(p["b2"]),
    )


def gcnn_forward(state, left, inputad, weights, *, block_b=None, t_chunk=None,
                 out_dtype=jnp.float32):
    """Pallas-backed GCNN forward.

    state: (B, S, D) f32, left: (B, L, D) f32 or None, inputad: (B, T, T) f32
    with T = L + S.  `weights` is the tuple returned by prepare_params.
    Returns (B, S, D) — the module's trailing `[:, L:, :]` slice is folded
    into the kernel (only state rows are computed and stored).
    """
    B, S, D = state.shape
    L = 0 if left is None else left.shape[1]
    T = L + S
    assert inputad.shape == (B, T, T), inputad.shape
    has_left = L > 0

    d_pad = weights[0].shape[0]
    mm_dtype = weights[0].dtype
    mm_bytes = jnp.dtype(mm_dtype).itemsize
    out_bytes = jnp.dtype(out_dtype).itemsize

    TC = t_chunk if t_chunk is not None else _pick_t_chunk(T)
    assert T % TC == 0 and (TC == T or TC % 128 == 0), (T, TC)
    n_t = T // TC

    BB = block_b if block_b is not None else _pick_block_b(
        B, S, L, T, d_pad, TC, mm_bytes, out_bytes)
    assert B % BB == 0, f"block_b={BB} must divide batch={B}"

    # Activations and the adjacency are passed as f32 and cast to the matmul
    # dtype inside the kernel (one HBM pass, no separate wrapper cast pass).
    # Feature padding only happens when D is not already a multiple of 128.
    def pad_x(x):
        return x if d_pad == D else jnp.pad(x, ((0, 0), (0, 0), (0, d_pad - D)))

    in_arrays = [pad_x(state)]
    in_specs = [pl.BlockSpec((BB, S, d_pad), lambda i, t: (i, 0, 0))]
    if has_left:
        in_arrays.append(pad_x(left))
        in_specs.append(pl.BlockSpec((BB, L, d_pad), lambda i, t: (i, 0, 0)))
    # TODO(synk): on v7x the adjacency could be fed as fp8 to halve its DMA/VMEM.
    in_arrays.append(inputad)
    in_specs.append(pl.BlockSpec((BB, T, TC), lambda i, t: (i, 0, t)))
    in_arrays += list(weights)
    in_specs += [_const_spec(w.shape) for w in weights]

    kernel = _make_gcnn_kernel(D, d_pad, L, S, TC, has_left, mm_dtype)

    est = _vmem_bytes_estimate(BB, S, L, T, d_pad, TC, mm_bytes, out_bytes)
    # 56 MiB fits every generation's physical VMEM (v7x has 64 MiB).
    vmem_limit = int(min(max(56 * _MIB, est + 8 * _MIB), 120 * _MIB))

    flops = int(2 * B * T * d_pad * d_pad         # x1 over all T rows
                + 2 * B * S * T * d_pad           # adjacency bmm (state rows)
                + 10 * B * S * d_pad * d_pad)     # q|k (4) + v + wo + w2
    transcendentals = int(3 * B * S * d_pad)      # three exps in the gate
    bytes_accessed = int(4 * (B * S * d_pad + B * L * d_pad + B * T * T)
                         + 6 * d_pad * d_pad * mm_bytes + 8 * d_pad * 4
                         + B * S * d_pad * out_bytes)

    out = pl.pallas_call(
        kernel,
        out_shape=jax.ShapeDtypeStruct((B, S, d_pad), out_dtype),
        grid_spec=pltpu.PrefetchScalarGridSpec(
            num_scalar_prefetch=0,
            grid=(B // BB, n_t),
            in_specs=in_specs,
            out_specs=pl.BlockSpec((BB, S, d_pad), lambda i, t: (i, 0, 0)),
            scratch_shapes=[
                pltpu.VMEM((BB, T, d_pad), mm_dtype),      # x1, all T rows
                pltpu.VMEM((BB, S, d_pad), jnp.float32),   # x1 state rows (f32)
                pltpu.VMEM((BB, S, d_pad), jnp.float32),   # z accumulator
            ]),
        compiler_params=pltpu.CompilerParams(
            dimension_semantics=("parallel", "arbitrary"),
            vmem_limit_bytes=vmem_limit),
        cost_estimate=pl.CostEstimate(flops=flops,
                                      transcendentals=transcendentals,
                                      bytes_accessed=bytes_accessed),
    )(*in_arrays)

    return out if d_pad == D else out[..., :D]


# --------------------------------------------------------------------------
# Pure-JAX reference (same matmul precision as the kernel) and test harness
# --------------------------------------------------------------------------
def gcnn_reference(state, left, inputad, params, mm_dtype=jnp.bfloat16):
    f32 = jnp.float32

    def mm(a, w, b):
        r = jnp.einsum("...i,ij->...j", a.astype(mm_dtype), w.astype(mm_dtype),
                       preferred_element_type=f32)
        return r + b

    L = 0 if left is None else left.shape[1]
    D = state.shape[-1]
    x = jnp.concatenate([left, state], axis=1) if left is not None else state

    x1 = mm(x, params["w1"], params["b1"])
    x1s = x1[:, L:, :]
    mean = jnp.mean(x1s, axis=-1, keepdims=True)
    var = jnp.sum((x1s - mean) ** 2, axis=-1, keepdims=True) / (D - 1)
    y = params["gamma"] * (x1s - mean) / (jnp.sqrt(var) + _EPS) + params["beta"]
    z = jnp.einsum("bst,btd->bsd", inputad[:, L:, :].astype(mm_dtype),
                   x1.astype(mm_dtype), preferred_element_type=f32)
    q = mm(y, params["wq"], params["bq"])
    k = mm(y, params["wk"], params["bk"])
    v = mm(z, params["wv"], params["bv"])
    m = jnp.maximum(jnp.maximum(q, k), v)
    eq, ek, ev = jnp.exp(q - m), jnp.exp(k - m), jnp.exp(v - m)
    comb = (eq * q + ek * k + ev * v) / (eq + ek + ev)
    x2 = x1s + mm(comb, params["wo"], params["bo"])
    return mm(x2, params["w2"], params["b2"])


def init_params(key, d):
    ks = jax.random.split(key, 12)

    def lin(kw, kb):
        bound = 1.0 / (d ** 0.5)
        w = jax.random.uniform(kw, (d, d), jnp.float32, -bound, bound)
        b = jax.random.uniform(kb, (1, d), jnp.float32, -bound, bound)
        return w, b

    w1, b1 = lin(ks[0], ks[1])
    wq, bq = lin(ks[2], ks[3])
    wk, bk = lin(ks[4], ks[5])
    wv, bv = lin(ks[6], ks[7])
    wo, bo = lin(ks[8], ks[9])
    w2, b2 = lin(ks[10], ks[11])
    return dict(w1=w1, b1=b1, wq=wq, bq=bq, wk=wk, bk=bk, wv=wv, bv=bv,
                wo=wo, bo=bo, w2=w2, b2=b2,
                gamma=jnp.ones((1, d), jnp.float32),
                beta=jnp.zeros((1, d), jnp.float32))


if __name__ == "__main__":
    key = jax.random.PRNGKey(0)

    # Prime the single-buffering probe once, outside any jit trace.
    _buffered_one_supported()

    def run_case(idx, B, L, S, D, t_chunk=None):
        T = L + S
        ks, kl, ka, kp = jax.random.split(jax.random.fold_in(key, idx), 4)
        state = jax.random.normal(ks, (B, S, D), jnp.float32)
        left = jax.random.normal(kl, (B, L, D), jnp.float32) if L else None
        inputad = jax.random.uniform(ka, (B, T, T), jnp.float32) / T
        params = init_params(kp, D)
        weights = prepare_params(params, D)     # once, outside the jitted fwd

        fwd = jax.jit(functools.partial(gcnn_forward, t_chunk=t_chunk))
        out = jax.block_until_ready(fwd(state, left, inputad, weights))
        assert out.shape == (B, S, D), out.shape
        assert bool(jnp.all(jnp.isfinite(out)))

        ref = jax.block_until_ready(gcnn_reference(state, left, inputad, params))
        err = float(jnp.max(jnp.abs(out - ref)))
        assert err < 5e-2, f"case {idx} (B={B} L={L} S={S} D={D}): err {err}"

    # dmodel=32 (divisible by the module's 8 heads), T = L + S = 16
    run_case(0, B=2, L=8, S=8, D=32)
    # left=None path
    run_case(1, B=2, L=0, S=8, D=32)
    # multi-chunk adjacency-contraction path (T = 256, 128-wide chunks)
    run_case(2, B=2, L=128, S=128, D=32, t_chunk=128)

    print("KERNEL_OK")
</pallas_src>

<mosaic_0001>
module attributes {stable_mosaic.version = 11 : i64} {
  func.func @_probe_copy_kernel(%arg0: i32, %arg1: memref<8x128xf32, #tpu.memory_space<vmem>>, %arg2: memref<8x128xf32, #tpu.memory_space<vmem>>) attributes {dimension_semantics = [#tpu.dimension_semantics<arbitrary>], iteration_bounds = array<i64: 1>, scalar_prefetch = 0 : i64, scratch_operands = 0 : i64, tpu.core_type = #tpu.core_type<tc>, window_params = [{pipeline_mode = #tpu.pipeline_mode<synchronous>, transform_indices = @transform_0, window_bounds = array<i64: 8, 128>}, {pipeline_mode = #tpu.pipeline_mode<synchronous>, transform_indices = @transform_1, window_bounds = array<i64: 8, 128>}]} {
    %c0 = arith.constant 0 : index
    %c0_0 = arith.constant 0 : index
    %0 = vector.load %arg1[%c0, %c0_0] : memref<8x128xf32, #tpu.memory_space<vmem>>, vector<8x128xf32>
    %c0_1 = arith.constant 0 : index
    %c0_2 = arith.constant 0 : index
    %1 = vector.load %arg2[%c0_1, %c0_2] : memref<8x128xf32, #tpu.memory_space<vmem>>, vector<8x128xf32>
    tpu.vector_store %arg2[%c0_1, %c0_2], %0 {strides = array<i32>} : memref<8x128xf32, #tpu.memory_space<vmem>>, vector<8x128xf32>,
    return
  }
  func.func @transform_0(%arg0: i32) -> (i32, i32) {
    %c0_i32 = arith.constant 0 : i32
    %c0_i32_0 = arith.constant 0 : i32
    %c0_i32_1 = arith.constant 0 : i32
    return %c0_i32, %c0_i32_0 : i32, i32
  }
  func.func @transform_1(%arg0: i32) -> (i32, i32) {
    %c0_i32 = arith.constant 0 : i32
    %c0_i32_0 = arith.constant 0 : i32
    %c0_i32_1 = arith.constant 0 : i32
    return %c0_i32, %c0_i32_0 : i32, i32
  }
}

module attributes {stable_mosaic.version = 11 : i64} {
  func.func @kernel(%arg0: i32, %arg1: i32, %arg2: memref<2x8x128xf32, #tpu.memory_space<vmem>>, %arg3: memref<2x8x128xf32, #tpu.memory_space<vmem>>, %arg4: memref<2x16x16xf32, #tpu.memory_space<vmem>>, %arg5: memref<128x128xbf16, #tpu.memory_space<vmem>>, %arg6: memref<1x128xf32, #tpu.memory_space<vmem>>, %arg7: memref<128x256xbf16, #tpu.memory_space<vmem>>, %arg8: memref<1x256xf32, #tpu.memory_space<vmem>>, %arg9: memref<128x128xbf16, #tpu.memory_space<vmem>>, %arg10: memref<1x128xf32, #tpu.memory_space<vmem>>, %arg11: memref<128x128xbf16, #tpu.memory_space<vmem>>, %arg12: memref<1x128xf32, #tpu.memory_space<vmem>>, %arg13: memref<1x128xf32, #tpu.memory_space<vmem>>, %arg14: memref<1x128xf32, #tpu.memory_space<vmem>>, %arg15: memref<128x128xbf16, #tpu.memory_space<vmem>>, %arg16: memref<1x128xf32, #tpu.memory_space<vmem>>, %arg17: memref<2x8x128xf32, #tpu.memory_space<vmem>>, %arg18: memref<2x16x128xbf16, #tpu.memory_space<vmem>>, %arg19: memref<2x8x128xf32, #tpu.memory_space<vmem>>, %arg20: memref<2x8x128xf32, #tpu.memory_space<vmem>>) attributes {dimension_semantics = [#tpu.dimension_semantics<parallel>, #tpu.dimension_semantics<arbitrary>], iteration_bounds = array<i64: 1, 1>, scalar_prefetch = 0 : i64, scratch_operands = 3 : i64, tpu.core_type = #tpu.core_type<tc>, window_params = [{transform_indices = @transform_0, window_bounds = array<i64: 2, 8, 128>}, {transform_indices = @transform_1, window_bounds = array<i64: 2, 8, 128>}, {transform_indices = @transform_2, window_bounds = array<i64: 2, 16, 16>}, {pipeline_mode = #tpu.pipeline_mode<synchronous>, transform_indices = @transform_3, window_bounds = array<i64: 128, 128>}, {pipeline_mode = #tpu.pipeline_mode<synchronous>, transform_indices = @transform_4, window_bounds = array<i64: 1, 128>}, {pipeline_mode = #tpu.pipeline_mode<synchronous>, transform_indices = @transform_5, window_bounds = array<i64: 128, 256>}, {pipeline_mode = #tpu.pipeline_mode<synchronous>, transform_indices = @transform_6, window_bounds = array<i64: 1, 256>}, {pipeline_mode = #tpu.pipeline_mode<synchronous>, transform_indices = @transform_7, window_bounds = array<i64: 128, 128>}, {pipeline_mode = #tpu.pipeline_mode<synchronous>, transform_indices = @transform_8, window_bounds = array<i64: 1, 128>}, {pipeline_mode = #tpu.pipeline_mode<synchronous>, transform_indices = @transform_9, window_bounds = array<i64: 128, 128>}, {pipeline_mode = #tpu.pipeline_mode<synchronous>, transform_indices = @transform_10, window_bounds = array<i64: 1, 128>}, {pipeline_mode = #tpu.pipeline_mode<synchronous>, transform_indices = @transform_11, window_bounds = array<i64: 1, 128>}, {pipeline_mode = #tpu.pipeline_mode<synchronous>, transform_indices = @transform_12, window_bounds = array<i64: 1, 128>}, {pipeline_mode = #tpu.pipeline_mode<synchronous>, transform_indices = @transform_13, window_bounds = array<i64: 128, 128>}, {pipeline_mode = #tpu.pipeline_mode<synchronous>, transform_indices = @transform_14, window_bounds = array<i64: 1, 128>}, {transform_indices = @transform_15, window_bounds = array<i64: 2, 8, 128>}]} {
    %c0_i32 = arith.constant 0 : i32
    %0 = arith.cmpi eq, %arg1, %c0_i32 : i32
    %1 = arith.extui %0 : i1 to i32
    %c0_i32_0 = arith.constant 0 : i32
    %2 = arith.cmpi ne, %1, %c0_i32_0 : i32
    scf.if %2 {
      %c0_13 = arith.constant 0 : index
      %c0_14 = arith.constant 0 : index
      %13 = vector.load %arg5[%c0_13, %c0_14] : memref<128x128xbf16, #tpu.memory_space<vmem>>, vector<128x128xbf16>
      %c0_15 = arith.constant 0 : index
      %c0_16 = arith.constant 0 : index
      %14 = vector.load %arg6[%c0_15, %c0_16] : memref<1x128xf32, #tpu.memory_space<vmem>>, vector<1x128xf32>
      %c0_17 = arith.constant 0 : index
      %c0_18 = arith.constant 0 : index
      %c0_19 = arith.constant 0 : index
      %15 = vector.load %arg2[%c0_17, %c0_18, %c0_19] : memref<2x8x128xf32, #tpu.memory_space<vmem>>, vector<2x8x128xf32>
      %16 = arith.truncf %15 : vector<2x8x128xf32> to vector<2x8x128xbf16>
      %17 = vector.shape_cast %16 : vector<2x8x128xbf16> to vector<16x128xbf16>
      %cst_20 = arith.constant dense<0.000000e+00> : vector<16x128xf32>
      %18 = tpu.matmul %17, %13, %cst_20 {dimension_numbers = #tpu.dot_dimension_numbers<[1], [0], [0], [1], [0, 0, 1, 1], [], []>} : vector<16x128xbf16>, vector<128x128xbf16>, vector<16x128xf32> -> vector<16x128xf32>
      %19 = vector.broadcast %14 : vector<1x128xf32> to vector<16x128xf32>
      %20 = arith.addf %18, %19 : vector<16x128xf32>
      %21 = vector.shape_cast %20 : vector<16x128xf32> to vector<2x8x128xf32>
      %c0_21 = arith.constant 0 : index
      %c0_22 = arith.constant 0 : index
      %c0_23 = arith.constant 0 : index
      %22 = vector.load %arg19[%c0_21, %c0_22, %c0_23] : memref<2x8x128xf32, #tpu.memory_space<vmem>>, vector<2x8x128xf32>
      tpu.vector_store %arg19[%c0_21, %c0_22, %c0_23], %21 {strides = array<i32>} : memref<2x8x128xf32, #tpu.memory_space<vmem>>, vector<2x8x128xf32>,
      %23 = vector.shape_cast %20 : vector<16x128xf32> to vector<2x8x128xf32>
      %24 = arith.truncf %23 : vector<2x8x128xf32> to vector<2x8x128xbf16>
      %c0_24 = arith.constant 0 : index
      %c8_25 = arith.constant 8 : index
      %c0_26 = arith.constant 0 : index
      %25 = vector.load %arg18[%c0_24, %c8_25, %c0_26] : memref<2x16x128xbf16, #tpu.memory_space<vmem>>, vector<2x8x128xbf16>
      tpu.vector_store %arg18[%c0_24, %c8_25, %c0_26], %24 {strides = array<i32>} : memref<2x16x128xbf16, #tpu.memory_space<vmem>>, vector<2x8x128xbf16>,
      %c0_27 = arith.constant 0 : index
      %c0_28 = arith.constant 0 : index
      %c0_29 = arith.constant 0 : index
      %26 = vector.load %arg3[%c0_27, %c0_28, %c0_29] : memref<2x8x128xf32, #tpu.memory_space<vmem>>, vector<2x8x128xf32>
      %27 = arith.truncf %26 : vector<2x8x128xf32> to vector<2x8x128xbf16>
      %28 = vector.shape_cast %27 : vector<2x8x128xbf16> to vector<16x128xbf16>
      %cst_30 = arith.constant dense<0.000000e+00> : vector<16x128xf32>
      %29 = tpu.matmul %28, %13, %cst_30 {dimension_numbers = #tpu.dot_dimension_numbers<[1], [0], [0], [1], [0, 0, 1, 1], [], []>} : vector<16x128xbf16>, vector<128x128xbf16>, vector<16x128xf32> -> vector<16x128xf32>
      %30 = vector.broadcast %14 : vector<1x128xf32> to vector<16x128xf32>
      %31 = arith.addf %29, %30 : vector<16x128xf32>
      %32 = vector.shape_cast %31 : vector<16x128xf32> to vector<2x8x128xf32>
      %33 = arith.truncf %32 : vector<2x8x128xf32> to vector<2x8x128xbf16>
      %c0_31 = arith.constant 0 : index
      %c0_32 = arith.constant 0 : index
      %c0_33 = arith.constant 0 : index
      %34 = vector.load %arg18[%c0_31, %c0_32, %c0_33] : memref<2x16x128xbf16, #tpu.memory_space<vmem>>, vector<2x8x128xbf16>
      tpu.vector_store %arg18[%c0_31, %c0_32, %c0_33], %33 {strides = array<i32>} : memref<2x16x128xbf16, #tpu.memory_space<vmem>>, vector<2x8x128xbf16>,
      %cst_34 = arith.constant 0.000000e+00 : f32
      %35 = vector.broadcast %cst_34 : f32 to vector<2x8x128xf32>
      %c0_35 = arith.constant 0 : index
      %c0_36 = arith.constant 0 : index
      %c0_37 = arith.constant 0 : index
      %36 = vector.load %arg20[%c0_35, %c0_36, %c0_37] : memref<2x8x128xf32, #tpu.memory_space<vmem>>, vector<2x8x128xf32>
      tpu.vector_store %arg20[%c0_35, %c0_36, %c0_37], %35 {strides = array<i32>} : memref<2x8x128xf32, #tpu.memory_space<vmem>>, vector<2x8x128xf32>,
    } else {
    }
    %c0 = arith.constant 0 : index
    %c8 = arith.constant 8 : index
    %c0_1 = arith.constant 0 : index
    %3 = vector.load %arg4[%c0, %c8, %c0_1] : memref<2x16x16xf32, #tpu.memory_space<vmem>>, vector<2x8x16xf32>
    %4 = arith.truncf %3 : vector<2x8x16xf32> to vector<2x8x16xbf16>
    %c0_2 = arith.constant 0 : index
    %c0_3 = arith.constant 0 : index
    %c0_4 = arith.constant 0 : index
    %5 = vector.load %arg18[%c0_2, %c0_3, %c0_4] : memref<2x16x128xbf16, #tpu.memory_space<vmem>>, vector<2x16x128xbf16>
    %c0_5 = arith.constant 0 : index
    %c0_6 = arith.constant 0 : index
    %c0_7 = arith.constant 0 : index
    %6 = vector.load %arg20[%c0_5, %c0_6, %c0_7] : memref<2x8x128xf32, #tpu.memory_space<vmem>>, vector<2x8x128xf32>
    "tpu.trace_start"() <{level = 10 : i32, message = "bst,btd->bsd"}> : () -> ()
    %cst = arith.constant dense<0.000000e+00> : vector<2x8x128xf32>
    %7 = tpu.matmul %4, %5, %cst {dimension_numbers = #tpu.dot_dimension_numbers<[2], [1], [1], [2], [0, 0, 0, 1, 1, 2], [0], [0]>} : vector<2x8x16xbf16>, vector<2x16x128xbf16>, vector<2x8x128xf32> -> vector<2x8x128xf32>
    "tpu.trace_stop"() : () -> ()
    %8 = arith.addf %6, %7 : vector<2x8x128xf32>
    %c0_8 = arith.constant 0 : index
    %c0_9 = arith.constant 0 : index
    %c0_10 = arith.constant 0 : index
    %9 = vector.load %arg20[%c0_8, %c0_9, %c0_10] : memref<2x8x128xf32, #tpu.memory_space<vmem>>, vector<2x8x128xf32>
    tpu.vector_store %arg20[%c0_8, %c0_9, %c0_10], %8 {strides = array<i32>} : memref<2x8x128xf32, #tpu.memory_space<vmem>>, vector<2x8x128xf32>,
    %c0_i32_11 = arith.constant 0 : i32
    %10 = arith.cmpi eq, %arg1, %c0_i32_11 : i32
    %11 = arith.extui %10 : i1 to i32
    %c0_i32_12 = arith.constant 0 : i32
    %12 = arith.cmpi ne, %11, %c0_i32_12 : i32
    scf.if %12 {
      %c0_13 = arith.constant 0 : index
      %c0_14 = arith.constant 0 : index
      %c0_15 = arith.constant 0 : index
      %13 = vector.load %arg19[%c0_13, %c0_14, %c0_15] : memref<2x8x128xf32, #tpu.memory_space<vmem>>, vector<2x8x128xf32>
      %14 = vector.shape_cast %13 : vector<2x8x128xf32> to vector<16x128xf32>
      %c0_16 = arith.constant 0 : index
      %c0_17 = arith.constant 0 : index
      %c0_18 = arith.constant 0 : index
      %15 = vector.load %arg20[%c0_16, %c0_17, %c0_18] : memref<2x8x128xf32, #tpu.memory_space<vmem>>, vector<2x8x128xf32>
      %16 = vector.shape_cast %15 : vector<2x8x128xf32> to vector<16x128xf32>
      %cst_19 = arith.constant dense<0.000000e+00> : vector<16xf32>
      %17 = vector.multi_reduction <add>, %14, %cst_19 [1] : vector<16x128xf32> to vector<16xf32>
      %18 = vector.shape_cast %17 : vector<16xf32> to vector<16x1xf32>
      %cst_20 = arith.constant 3.125000e-02 : f32
      %19 = vector.broadcast %cst_20 : f32 to vector<16x1xf32>
      %20 = arith.mulf %18, %19 : vector<16x1xf32>
      %21 = vector.broadcast %20 : vector<16x1xf32> to vector<16x128xf32>
      %22 = arith.subf %14, %21 : vector<16x128xf32>
      %23 = tpu.iota {dimensions = array<i32: 1>} : vector<1x128xi32>
      %c32_i32 = arith.constant 32 : i32
      %24 = vector.broadcast %c32_i32 : i32 to vector<1x128xi32>
      %25 = arith.cmpi slt, %23, %24 : vector<1x128xi32>
      %cst_21 = arith.constant 0.000000e+00 : f32
      %26 = vector.shape_cast %25 : vector<1x128xi1> to vector<1x128xi1>
      %27 = vector.broadcast %26 : vector<1x128xi1> to vector<16x128xi1>
      %28 = vector.broadcast %cst_21 : f32 to vector<16x128xf32>
      %29 = arith.select %27, %22, %28 : vector<16x128xi1>, vector<16x128xf32>
      %30 = arith.mulf %29, %29 : vector<16x128xf32>
      %cst_22 = arith.constant dense<0.000000e+00> : vector<16xf32>
      %31 = vector.multi_reduction <add>, %30, %cst_22 [1] : vector<16x128xf32> to vector<16xf32>
      %32 = vector.shape_cast %31 : vector<16xf32> to vector<16x1xf32>
      %cst_23 = arith.constant 0.0322580636 : f32
      %33 = vector.broadcast %cst_23 : f32 to vector<16x1xf32>
      %34 = arith.mulf %32, %33 : vector<16x1xf32>
      %35 = math.sqrt %34 : vector<16x1xf32>
      %cst_24 = arith.constant 9.99999997E-7 : f32
      %36 = vector.broadcast %cst_24 : f32 to vector<16x1xf32>
      %37 = arith.addf %35, %36 : vector<16x1xf32>
      %cst_25 = arith.constant 1.000000e+00 : f32
      %38 = vector.broadcast %cst_25 : f32 to vector<16x1xf32>
      %39 = arith.divf %38, %37 : vector<16x1xf32>
      %c0_26 = arith.constant 0 : index
      %c0_27 = arith.constant 0 : index
      %40 = vector.load %arg13[%c0_26, %c0_27] : memref<1x128xf32, #tpu.memory_space<vmem>>, vector<1x128xf32>
      %41 = vector.broadcast %39 : vector<16x1xf32> to vector<16x128xf32>
      %42 = arith.mulf %29, %41 : vector<16x128xf32>
      %43 = vector.broadcast %40 : vector<1x128xf32> to vector<16x128xf32>
      %44 = arith.mulf %43, %42 : vector<16x128xf32>
      %c0_28 = arith.constant 0 : index
      %c0_29 = arith.constant 0 : index
      %45 = vector.load %arg14[%c0_28, %c0_29] : memref<1x128xf32, #tpu.memory_space<vmem>>, vector<1x128xf32>
      %46 = vector.broadcast %45 : vector<1x128xf32> to vector<16x128xf32>
      %47 = arith.addf %44, %46 : vector<16x128xf32>
      %48 = arith.truncf %47 : vector<16x128xf32> to vector<16x128xbf16>
      %c0_30 = arith.constant 0 : index
      %c0_31 = arith.constant 0 : index
      %49 = vector.load %arg7[%c0_30, %c0_31] : memref<128x256xbf16, #tpu.memory_space<vmem>>, vector<128x256xbf16>
      %cst_32 = arith.constant dense<0.000000e+00> : vector<16x256xf32>
      %50 = tpu.matmul %48, %49, %cst_32 {dimension_numbers = #tpu.dot_dimension_numbers<[1], [0], [0], [1], [0, 0, 1, 1], [], []>} : vector<16x128xbf16>, vector<128x256xbf16>, vector<16x256xf32> -> vector<16x256xf32>
      %c0_33 = arith.constant 0 : index
      %c0_34 = arith.constant 0 : index
      %51 = vector.load %arg8[%c0_33, %c0_34] : memref<1x256xf32, #tpu.memory_space<vmem>>, vector<1x256xf32>
      %52 = vector.broadcast %51 : vector<1x256xf32> to vector<16x256xf32>
      %53 = arith.addf %50, %52 : vector<16x256xf32>
      %54 = vector.extract_strided_slice %53 {offsets = [0, 0], sizes = [16, 128], strides = [1, 1]} : vector<16x256xf32> to vector<16x128xf32>
      %55 = vector.extract_strided_slice %53 {offsets = [0, 128], sizes = [16, 128], strides = [1, 1]} : vector<16x256xf32> to vector<16x128xf32>
      %56 = arith.truncf %16 : vector<16x128xf32> to vector<16x128xbf16>
      %c0_35 = arith.constant 0 : index
      %c0_36 = arith.constant 0 : index
      %57 = vector.load %arg9[%c0_35, %c0_36] : memref<128x128xbf16, #tpu.memory_space<vmem>>, vector<128x128xbf16>
      %cst_37 = arith.constant dense<0.000000e+00> : vector<16x128xf32>
      %58 = tpu.matmul %56, %57, %cst_37 {dimension_numbers = #tpu.dot_dimension_numbers<[1], [0], [0], [1], [0, 0, 1, 1], [], []>} : vector<16x128xbf16>, vector<128x128xbf16>, vector<16x128xf32> -> vector<16x128xf32>
      %c0_38 = arith.constant 0 : index
      %c0_39 = arith.constant 0 : index
      %59 = vector.load %arg10[%c0_38, %c0_39] : memref<1x128xf32, #tpu.memory_space<vmem>>, vector<1x128xf32>
      %60 = vector.broadcast %59 : vector<1x128xf32> to vector<16x128xf32>
      %61 = arith.addf %58, %60 : vector<16x128xf32>
      %62 = arith.maximumf %54, %55 : vector<16x128xf32>
      %63 = arith.maximumf %62, %61 : vector<16x128xf32>
      %64 = arith.subf %54, %63 : vector<16x128xf32>
      %65 = math.exp %64 : vector<16x128xf32>
      %66 = arith.subf %55, %63 : vector<16x128xf32>
      %67 = math.exp %66 : vector<16x128xf32>
      %68 = arith.subf %61, %63 : vector<16x128xf32>
      %69 = math.exp %68 : vector<16x128xf32>
      %70 = arith.mulf %65, %54 : vector<16x128xf32>
      %71 = arith.mulf %67, %55 : vector<16x128xf32>
      %72 = arith.addf %70, %71 : vector<16x128xf32>
      %73 = arith.mulf %69, %61 : vector<16x128xf32>
      %74 = arith.addf %72, %73 : vector<16x128xf32>
      %75 = arith.addf %65, %67 : vector<16x128xf32>
      %76 = arith.addf %75, %69 : vector<16x128xf32>
      %77 = tpu.reciprocal %76 {approx = true} : vector<16x128xf32> -> vector<16x128xf32>
      %78 = arith.mulf %74, %77 : vector<16x128xf32>
      %79 = arith.truncf %78 : vector<16x128xf32> to vector<16x128xbf16>
      %c0_40 = arith.constant 0 : index
      %c0_41 = arith.constant 0 : index
      %80 = vector.load %arg11[%c0_40, %c0_41] : memref<128x128xbf16, #tpu.memory_space<vmem>>, vector<128x128xbf16>
      %cst_42 = arith.constant dense<0.000000e+00> : vector<16x128xf32>
      %81 = tpu.matmul %79, %80, %cst_42 {dimension_numbers = #tpu.dot_dimension_numbers<[1], [0], [0], [1], [0, 0, 1, 1], [], []>} : vector<16x128xbf16>, vector<128x128xbf16>, vector<16x128xf32> -> vector<16x128xf32>
      %c0_43 = arith.constant 0 : index
      %c0_44 = arith.constant 0 : index
      %82 = vector.load %arg12[%c0_43, %c0_44] : memref<1x128xf32, #tpu.memory_space<vmem>>, vector<1x128xf32>
      %83 = vector.broadcast %82 : vector<1x128xf32> to vector<16x128xf32>
      %84 = arith.addf %81, %83 : vector<16x128xf32>
      %85 = arith.addf %14, %84 : vector<16x128xf32>
      %86 = arith.truncf %85 : vector<16x128xf32> to vector<16x128xbf16>
      %c0_45 = arith.constant 0 : index
      %c0_46 = arith.constant 0 : index
      %87 = vector.load %arg15[%c0_45, %c0_46] : memref<128x128xbf16, #tpu.memory_space<vmem>>, vector<128x128xbf16>
      %cst_47 = arith.constant dense<0.000000e+00> : vector<16x128xf32>
      %88 = tpu.matmul %86, %87, %cst_47 {dimension_numbers = #tpu.dot_dimension_numbers<[1], [0], [0], [1], [0, 0, 1, 1], [], []>} : vector<16x128xbf16>, vector<128x128xbf16>, vector<16x128xf32> -> vector<16x128xf32>
      %c0_48 = arith.constant 0 : index
      %c0_49 = arith.constant 0 : index
      %89 = vector.load %arg16[%c0_48, %c0_49] : memref<1x128xf32, #tpu.memory_space<vmem>>, vector<1x128xf32>
      %90 = vector.broadcast %89 : vector<1x128xf32> to vector<16x128xf32>
      %91 = arith.addf %88, %90 : vector<16x128xf32>
      %92 = vector.shape_cast %91 : vector<16x128xf32> to vector<2x8x128xf32>
      %c0_50 = arith.constant 0 : index
      %c0_51 = arith.constant 0 : index
      %c0_52 = arith.constant 0 : index
      %93 = vector.load %arg17[%c0_50, %c0_51, %c0_52] : memref<2x8x128xf32, #tpu.memory_space<vmem>>, vector<2x8x128xf32>
      tpu.vector_store %arg17[%c0_50, %c0_51, %c0_52], %92 {strides = array<i32>} : memref<2x8x128xf32, #tpu.memory_space<vmem>>, vector<2x8x128xf32>,
    } else {
    }
    return
  }
  func.func @transform_0(%arg0: i32, %arg1: i32) -> (i32, i32, i32) {
    %c0_i32 = arith.constant 0 : i32
    %c0_i32_0 = arith.constant 0 : i32
    %c0_i32_1 = arith.constant 0 : i32
    return %arg0, %c0_i32, %c0_i32_0 : i32, i32, i32
  }
  func.func @transform_1(%arg0: i32, %arg1: i32) -> (i32, i32, i32) {
    %c0_i32 = arith.constant 0 : i32
    %c0_i32_0 = arith.constant 0 : i32
    %c0_i32_1 = arith.constant 0 : i32
    return %arg0, %c0_i32, %c0_i32_0 : i32, i32, i32
  }
  func.func @transform_2(%arg0: i32, %arg1: i32) -> (i32, i32, i32) {
    %c0_i32 = arith.constant 0 : i32
    %c0_i32_0 = arith.constant 0 : i32
    return %arg0, %c0_i32, %arg1 : i32, i32, i32
  }
  func.func @transform_3(%arg0: i32, %arg1: i32) -> (i32, i32) {
    %c0_i32 = arith.constant 0 : i32
    %c0_i32_0 = arith.constant 0 : i32
    %c0_i32_1 = arith.constant 0 : i32
    return %c0_i32, %c0_i32_0 : i32, i32
  }
  func.func @transform_4(%arg0: i32, %arg1: i32) -> (i32, i32) {
    %c0_i32 = arith.constant 0 : i32
    %c0_i32_0 = arith.constant 0 : i32
    %c0_i32_1 = arith.constant 0 : i32
    return %c0_i32, %c0_i32_0 : i32, i32
  }
  func.func @transform_5(%arg0: i32, %arg1: i32) -> (i32, i32) {
    %c0_i32 = arith.constant 0 : i32
    %c0_i32_0 = arith.constant 0 : i32
    %c0_i32_1 = arith.constant 0 : i32
    return %c0_i32, %c0_i32_0 : i32, i32
  }
  func.func @transform_6(%arg0: i32, %arg1: i32) -> (i32, i32) {
    %c0_i32 = arith.constant 0 : i32
    %c0_i32_0 = arith.constant 0 : i32
    %c0_i32_1 = arith.constant 0 : i32
    return %c0_i32, %c0_i32_0 : i32, i32
  }
  func.func @transform_7(%arg0: i32, %arg1: i32) -> (i32, i32) {
    %c0_i32 = arith.constant 0 : i32
    %c0_i32_0 = arith.constant 0 : i32
    %c0_i32_1 = arith.constant 0 : i32
    return %c0_i32, %c0_i32_0 : i32, i32
  }
  func.func @transform_8(%arg0: i32, %arg1: i32) -> (i32, i32) {
    %c0_i32 = arith.constant 0 : i32
    %c0_i32_0 = arith.constant 0 : i32
    %c0_i32_1 = arith.constant 0 : i32
    return %c0_i32, %c0_i32_0 : i32, i32
  }
  func.func @transform_9(%arg0: i32, %arg1: i32) -> (i32, i32) {
    %c0_i32 = arith.constant 0 : i32
    %c0_i32_0 = arith.constant 0 : i32
    %c0_i32_1 = arith.constant 0 : i32
    return %c0_i32, %c0_i32_0 : i32, i32
  }
  func.func @transform_10(%arg0: i32, %arg1: i32) -> (i32, i32) {
    %c0_i32 = arith.constant 0 : i32
    %c0_i32_0 = arith.constant 0 : i32
    %c0_i32_1 = arith.constant 0 : i32
    return %c0_i32, %c0_i32_0 : i32, i32
  }
  func.func @transform_11(%arg0: i32, %arg1: i32) -> (i32, i32) {
    %c0_i32 = arith.constant 0 : i32
    %c0_i32_0 = arith.constant 0 : i32
    %c0_i32_1 = arith.constant 0 : i32
    return %c0_i32, %c0_i32_0 : i32, i32
  }
  func.func @transform_12(%arg0: i32, %arg1: i32) -> (i32, i32) {
    %c0_i32 = arith.constant 0 : i32
    %c0_i32_0 = arith.constant 0 : i32
    %c0_i32_1 = arith.constant 0 : i32
    return %c0_i32, %c0_i32_0 : i32, i32
  }
  func.func @transform_13(%arg0: i32, %arg1: i32) -> (i32, i32) {
    %c0_i32 = arith.constant 0 : i32
    %c0_i32_0 = arith.constant 0 : i32
    %c0_i32_1 = arith.constant 0 : i32
    return %c0_i32, %c0_i32_0 : i32, i32
  }
  func.func @transform_14(%arg0: i32, %arg1: i32) -> (i32, i32) {
    %c0_i32 = arith.constant 0 : i32
    %c0_i32_0 = arith.constant 0 : i32
    %c0_i32_1 = arith.constant 0 : i32
    return %c0_i32, %c0_i32_0 : i32, i32
  }
  func.func @transform_15(%arg0: i32, %arg1: i32) -> (i32, i32, i32) {
    %c0_i32 = arith.constant 0 : i32
    %c0_i32_0 = arith.constant 0 : i32
    %c0_i32_1 = arith.constant 0 : i32
    return %arg0, %c0_i32, %c0_i32_0 : i32, i32, i32
  }
}

</mosaic_0001>

<llo_original>
// kernel: tpu_custom_call.1
$region0: #{tpu_custom_call.1}
  #allocation0 [shape = 'u32[]', space=smem, size = 0x4, offset = 0x4, fixed_abs, tag = 'smem constant byte address 0x4 - core index']
  #allocation1 [shape = 'u32[144,128]{1,0:T(1,128)}', space=vmem, size = 0x12000, scoped, tag = 'internal scratch']
  %s0 = inlined_call_operand.hbm [shape: f32[8,128], index: 0, kind: input, shape index: {}]
  %s1 = inlined_call_operand.hbm [shape: f32[8,128], index: 1, kind: output, shape index: {}]
  %s2 = sld [smem:[#allocation0]]
  $region18: #{tpu_custom_call.1} parent=0
    _
  %s4 = ssub.s32 1, %s2
  %s5 = scalar_select 0, %s4, %s2
  $region1: #{tpu_custom_call.1} parent=0
    #allocation2 [shape = 'u8[4096]{0}', space=vmem, size = 0x1000, scoped, tag = 'input window, operand 0, single buffered']
    #allocation3 [shape = 's32[1]{0}', space=sflag, size = 0x4, scoped, tag = 'scoped memory for tpu_custom_call.1']
    #allocation4 [shape = 's32[1]{0}', space=sflag, size = 0x4, scoped, tag = 'scoped memory for tpu_custom_call.1']
    #allocation5 [shape = 'u8[4096]{0}', space=vmem, size = 0x1000, scoped, tag = 'output window, operand 0, single buffered']
    %6 = vsyncpa [#allocation3], 0
    %7 = vsyncpa [#allocation4], 0
    // Predicated region
    $region2: #{tpu_custom_call.1} parent=1 // pred_check
      _
    $region3: #{tpu_custom_call.1} parent=1 // pred_check_branch
      %9 = sbr.rel (0) target = $region5
    $region4: #{tpu_custom_call.1} parent=1 // pred_region
      %s11 = ssub.s32 128, 128
      %12 = vsyncadd [#allocation3], %s11
      %s14 = sshll.u32 [#allocation2], 4
      %s15 = int_to_ptr.vmem [resolvable:$true] %s14
      %17 = dma.hbm_to_vmem [thread:$0]  %s0, 128, %s15, [#allocation3]
    $region5: #{tpu_custom_call.1} parent=1 // pred_fallthru
      _
    // Predicated region
    $region6: #{tpu_custom_call.1} parent=1 // pred_check
      _
    $region7: #{tpu_custom_call.1} parent=1 // pred_check_branch
      %19 = sbr.rel (0) target = $region9
    $region8: #{tpu_custom_call.1} parent=1 // pred_region
      %20 = dma.done [#allocation3], 128
    $region9: #{tpu_custom_call.1} parent=1 // pred_fallthru
      _
    %v21 = vld [vmem:[#allocation2] sm:$0xff]
    %22 = vst [vmem:[#allocation5] sm:$0xff] %v21
    // Predicated region
    $region10: #{tpu_custom_call.1} parent=1 // pred_check
      _
    $region11: #{tpu_custom_call.1} parent=1 // pred_check_branch
      %24 = sbr.rel (0) target = $region13
    $region12: #{tpu_custom_call.1} parent=1 // pred_region
      %s26 = ssub.s32 128, 128
      %27 = vsyncadd [#allocation4], %s26
      %s29 = sshll.u32 [#allocation5], 4
      %s30 = int_to_ptr.vmem [resolvable:$true] %s29
      %32 = dma.vmem_to_hbm [thread:$0]  %s30, 128, %s1, [#allocation4]
    $region13: #{tpu_custom_call.1} parent=1 // pred_fallthru
      _
    // Predicated region
    $region14: #{tpu_custom_call.1} parent=1 // pred_check
      _
    $region15: #{tpu_custom_call.1} parent=1 // pred_check_branch
      %34 = sbr.rel (0) target = $region17
    $region16: #{tpu_custom_call.1} parent=1 // pred_region
      %35 = dma.done [#allocation4], 128
    $region17: #{tpu_custom_call.1} parent=1 // pred_fallthru
      _
    %36 = vsyncpa [#allocation3], 1
    %37 = vsyncpa [#allocation4], 1

// kernel: gcnn_forward.1
$region0: #{gcnn_forward.1}
  #allocation0 [shape = 'u32[]', space=smem, size = 0x4, offset = 0x4, fixed_abs, tag = 'smem constant byte address 0x4 - core index']
  #allocation1 [shape = 'u32[144,128]{1,0:T(1,128)}', space=vmem, size = 0x12000, scoped, tag = 'internal scratch']
  #allocation2 [shape = 'bf16[2,16,128]{2,1,0:T(16,128)(2,1)}', space=vmem, size = 0x2000, scoped, tag = 'scratch operand']
  #allocation3 [shape = 'f32[2,8,128]{2,1,0:T(8,128)}', space=vmem, size = 0x2000, scoped, tag = 'scratch operand']
  #allocation4 [shape = 'f32[2,8,128]{2,1,0:T(8,128)}', space=vmem, size = 0x2000, scoped, tag = 'scratch operand']
  %s0 = inlined_call_operand.vmem [shape: f32[2,8,128], index: 0, kind: input, shape index: {}]
  %s1 = inlined_call_operand.vmem [shape: f32[2,8,128], index: 1, kind: input, shape index: {}]
  %s2 = inlined_call_operand.hbm [shape: f32[2,16,16], index: 2, kind: input, shape index: {}]
  %s3 = inlined_call_operand.vmem [shape: bf16[128,128], index: 3, kind: input, shape index: {}]
  %s4 = inlined_call_operand.vmem [shape: f32[1,128], index: 4, kind: input, shape index: {}]
  %s5 = inlined_call_operand.hbm [shape: bf16[128,256], index: 5, kind: input, shape index: {}]
  %s6 = inlined_call_operand.vmem [shape: f32[1,256], index: 6, kind: input, shape index: {}]
  %s7 = inlined_call_operand.hbm [shape: bf16[128,128], index: 7, kind: input, shape index: {}]
  %s8 = inlined_call_operand.vmem [shape: f32[1,128], index: 8, kind: input, shape index: {}]
  %s9 = inlined_call_operand.hbm [shape: bf16[128,128], index: 9, kind: input, shape index: {}]
  %s10 = inlined_call_operand.vmem [shape: f32[1,128], index: 10, kind: input, shape index: {}]
  %s11 = inlined_call_operand.vmem [shape: f32[1,128], index: 11, kind: input, shape index: {}]
  %s12 = inlined_call_operand.vmem [shape: f32[1,128], index: 12, kind: input, shape index: {}]
  %s13 = inlined_call_operand.hbm [shape: bf16[128,128], index: 13, kind: input, shape index: {}]
  %s14 = inlined_call_operand.vmem [shape: f32[1,128], index: 14, kind: input, shape index: {}]
  %s15 = inlined_call_operand.hbm [shape: f32[2,8,128], index: 15, kind: output, shape index: {}]
  %s16 = sld [smem:[#allocation0]]
  $region98: #{gcnn_forward.1} parent=0
    _
  %s18 = ssub.s32 1, %s16
  %s19 = scalar_select 0, %s18, %s16
  $region1: #{gcnn_forward.1} parent=0
    #allocation5 [shape = 'u8[16384]{0}', space=vmem, size = 0x4000, scoped, tag = 'input window, operand 2, single buffered']
    #allocation6 [shape = 's32[1]{0}', space=sflag, size = 0x4, scoped, tag = 'scoped memory for gcnn_forward.1']
    #allocation7 [shape = 's32[1]{0}', space=sflag, size = 0x4, scoped, tag = 'scoped memory for gcnn_forward.1']
    #allocation8 [shape = 'u8[65536]{0}', space=vmem, size = 0x10000, scoped, tag = 'input window, operand 5, single buffered']
    #allocation9 [shape = 's32[1]{0}', space=sflag, size = 0x4, scoped, tag = 'scoped memory for gcnn_forward.1']
    #allocation10 [shape = 'u8[32768]{0}', space=vmem, size = 0x8000, scoped, tag = 'input window, operand 7, single buffered']
    #allocation11 [shape = 'u8[32768]{0}', space=vmem, size = 0x8000, scoped, tag = 'input window, operand 9, single buffered']
    #allocation12 [shape = 's32[1]{0}', space=sflag, size = 0x4, scoped, tag = 'scoped memory for gcnn_forward.1']
    #allocation13 [shape = 'u8[32768]{0}', space=vmem, size = 0x8000, scoped, tag = 'input window, operand 13, single buffered']
    #allocation14 [shape = 'u8[8192]{0}', space=vmem, size = 0x2000, scoped, tag = 'output window, operand 0, single buffered']
    %20 = vsyncpa [#allocation6], 0
    %21 = vsyncpa [#allocation9], 0
    %22 = vsyncpa [#allocation12], 0
    %23 = vsyncpa [#allocation7], 0
    // Predicated region
    $region2: #{gcnn_forward.1} parent=1 // pred_check
      _
    $region3: #{gcnn_forward.1} parent=1 // pred_check_branch
      %25 = sbr.rel (0) target = $region5
    $region4: #{gcnn_forward.1} parent=1 // pred_region
      _
    $region5: #{gcnn_forward.1} parent=1 // pred_fallthru
      _
    // Predicated region
    $region6: #{gcnn_forward.1} parent=1 // pred_check
      _
    $region7: #{gcnn_forward.1} parent=1 // pred_check_branch
      %27 = sbr.rel (0) target = $region9
    $region8: #{gcnn_forward.1} parent=1 // pred_region
      _
    $region9: #{gcnn_forward.1} parent=1 // pred_fallthru
      _
    // Predicated region
    $region10: #{gcnn_forward.1} parent=1 // pred_check
      _
    $region11: #{gcnn_forward.1} parent=1 // pred_check_branch
      %29 = sbr.rel (0) target = $region13
    $region12: #{gcnn_forward.1} parent=1 // pred_region
      %s31 = ssub.s32 512, 512
      %32 = vsyncadd [#allocation6], %s31
      %s33 = sshll.u32 [#allocation5], 4
      %s34 = int_to_ptr.vmem [resolvable:$true] %s33
      %39 = dma.hbm_to_vmem [thread:$0]  %s2, 512, %s34, [#allocation6], 128, 128, 8
    $region13: #{gcnn_forward.1} parent=1 // pred_fallthru
      _
    // Predicated region
    $region14: #{gcnn_forward.1} parent=1 // pred_check
      _
    $region15: #{gcnn_forward.1} parent=1 // pred_check_branch
      %41 = sbr.rel (0) target = $region17
    $region16: #{gcnn_forward.1} parent=1 // pred_region
      _
    $region17: #{gcnn_forward.1} parent=1 // pred_fallthru
      _
    // Predicated region
    $region18: #{gcnn_forward.1} parent=1 // pred_check
      _
    $region19: #{gcnn_forward.1} parent=1 // pred_check_branch
      %43 = sbr.rel (0) target = $region21
    $region20: #{gcnn_forward.1} parent=1 // pred_region
      _
    $region21: #{gcnn_forward.1} parent=1 // pred_fallthru
      _
    // Predicated region
    $region22: #{gcnn_forward.1} parent=1 // pred_check
      _
    $region23: #{gcnn_forward.1} parent=1 // pred_check_branch
      %45 = sbr.rel (0) target = $region25
    $region24: #{gcnn_forward.1} parent=1 // pred_region
      %s47 = ssub.s32 2048, 2048
      %48 = vsyncadd [#allocation9], %s47
      %s49 = sshll.u32 [#allocation8], 4
      %s50 = int_to_ptr.vmem [resolvable:$true] %s49
      %55 = dma.hbm_to_vmem [thread:$0]  %s5, 2048, %s50, [#allocation9], 128, 128, 8
    $region25: #{gcnn_forward.1} parent=1 // pred_fallthru
      _
    // Predicated region
    $region26: #{gcnn_forward.1} parent=1 // pred_check
      _
    $region27: #{gcnn_forward.1} parent=1 // pred_check_branch
      %57 = sbr.rel (0) target = $region29
    $region28: #{gcnn_forward.1} parent=1 // pred_region
      _
    $region29: #{gcnn_forward.1} parent=1 // pred_fallthru
      _
    // Predicated region
    $region30: #{gcnn_forward.1} parent=1 // pred_check
      _
    $region31: #{gcnn_forward.1} parent=1 // pred_check_branch
      %59 = sbr.rel (0) target = $region33
    $region32: #{gcnn_forward.1} parent=1 // pred_region
      %s61 = ssub.s32 1024, 1024
      %62 = vsyncadd [#allocation9], %s61
      %s63 = sshll.u32 [#allocation10], 4
      %s64 = int_to_ptr.vmem [resolvable:$true] %s63
      %69 = dma.hbm_to_vmem [thread:$0]  %s7, 1024, %s64, [#allocation9], 64, 64, 4
    $region33: #{gcnn_forward.1} parent=1 // pred_fallthru
      _
    // Predicated region
    $region34: #{gcnn_forward.1} parent=1 // pred_check
      _
    $region35: #{gcnn_forward.1} parent=1 // pred_check_branch
      %71 = sbr.rel (0) target = $region37
    $region36: #{gcnn_forward.1} parent=1 // pred_region
      _
    $region37: #{gcnn_forward.1} parent=1 // pred_fallthru
      _
    // Predicated region
    $region38: #{gcnn_forward.1} parent=1 // pred_check
      _
    $region39: #{gcnn_forward.1} parent=1 // pred_check_branch
      %73 = sbr.rel (0) target = $region41
    $region40: #{gcnn_forward.1} parent=1 // pred_region
      %s75 = ssub.s32 1024, 1024
      %76 = vsyncadd [#allocation12], %s75
      %s77 = sshll.u32 [#allocation11], 4
      %s78 = int_to_ptr.vmem [resolvable:$true] %s77
      %83 = dma.hbm_to_vmem [thread:$0]  %s9, 1024, %s78, [#allocation12], 64, 64, 4
    $region41: #{gcnn_forward.1} parent=1 // pred_fallthru
      _
    // Predicated region
    $region42: #{gcnn_forward.1} parent=1 // pred_check
      _
    $region43: #{gcnn_forward.1} parent=1 // pred_check_branch
      %85 = sbr.rel (0) target = $region45
    $region44: #{gcnn_forward.1} parent=1 // pred_region
      _
    $region45: #{gcnn_forward.1} parent=1 // pred_fallthru
      _
    // Predicated region
    $region46: #{gcnn_forward.1} parent=1 // pred_check
      _
    $region47: #{gcnn_forward.1} parent=1 // pred_check_branch
      %87 = sbr.rel (0) target = $region49
    $region48: #{gcnn_forward.1} parent=1 // pred_region
      _
    $region49: #{gcnn_forward.1} parent=1 // pred_fallthru
      _
    // Predicated region
    $region50: #{gcnn_forward.1} parent=1 // pred_check
      _
    $region51: #{gcnn_forward.1} parent=1 // pred_check_branch
      %89 = sbr.rel (0) target = $region53
    $region52: #{gcnn_forward.1} parent=1 // pred_region
      _
    $region53: #{gcnn_forward.1} parent=1 // pred_fallthru
      _
    // Predicated region
    $region54: #{gcnn_forward.1} parent=1 // pred_check
      _
    $region55: #{gcnn_forward.1} parent=1 // pred_check_branch
      %91 = sbr.rel (0) target = $region57
    $region56: #{gcnn_forward.1} parent=1 // pred_region
      %s93 = ssub.s32 1024, 1024
      %94 = vsyncadd [#allocation12], %s93
      %s95 = sshll.u32 [#allocation13], 4
      %s96 = int_to_ptr.vmem [resolvable:$true] %s95
      %101 = dma.hbm_to_vmem [thread:$0]  %s13, 1024, %s96, [#allocation12], 64, 64, 4
    $region57: #{gcnn_forward.1} parent=1 // pred_fallthru
      _
    // Predicated region
    $region58: #{gcnn_forward.1} parent=1 // pred_check
      _
    $region59: #{gcnn_forward.1} parent=1 // pred_check_branch
      %103 = sbr.rel (0) target = $region61
    $region60: #{gcnn_forward.1} parent=1 // pred_region
      _
    $region61: #{gcnn_forward.1} parent=1 // pred_fallthru
      _
    // Predicated region
    $region62: #{gcnn_forward.1} parent=1 // pred_check
      _
    $region63: #{gcnn_forward.1} parent=1 // pred_check_branch
      %105 = sbr.rel (0) target = $region65
    $region64: #{gcnn_forward.1} parent=1 // pred_region
      %106 = dma.done [#allocation6], 512
    $region65: #{gcnn_forward.1} parent=1 // pred_fallthru
      _
    // Predicated region
    $region66: #{gcnn_forward.1} parent=1 // pred_check
      _
    $region67: #{gcnn_forward.1} parent=1 // pred_check_branch
      %108 = sbr.rel (0) target = $region69
    $region68: #{gcnn_forward.1} parent=1 // pred_region
      %109 = dma.done [#allocation9], 2048
    $region69: #{gcnn_forward.1} parent=1 // pred_fallthru
      _
    // Predicated region
    $region70: #{gcnn_forward.1} parent=1 // pred_check
      _
    $region71: #{gcnn_forward.1} parent=1 // pred_check_branch
      %111 = sbr.rel (0) target = $region73
    $region72: #{gcnn_forward.1} parent=1 // pred_region
      %112 = dma.done [#allocation9], 1024
    $region73: #{gcnn_forward.1} parent=1 // pred_fallthru
      _
    // Predicated region
    $region74: #{gcnn_forward.1} parent=1 // pred_check
      _
    $region75: #{gcnn_forward.1} parent=1 // pred_check_branch
      %114 = sbr.rel (0) target = $region77
    $region76: #{gcnn_forward.1} parent=1 // pred_region
      %115 = dma.done [#allocation12], 1024
    $region77: #{gcnn_forward.1} parent=1 // pred_fallthru
      _
    // Predicated region
    $region78: #{gcnn_forward.1} parent=1 // pred_check
      _
    $region79: #{gcnn_forward.1} parent=1 // pred_check_branch
      %117 = sbr.rel (0) target = $region81
    $region80: #{gcnn_forward.1} parent=1 // pred_region
      %118 = dma.done [#allocation12], 1024
    $region81: #{gcnn_forward.1} parent=1 // pred_fallthru
      _
    %p120 = scmp.eq.s32.totalorder 0, 0
    // Predicated region
    $region82: #{gcnn_forward.1} parent=1 // pred_check
      %p121 = pneg %p120
    $region83: #{gcnn_forward.1} parent=1 // pred_check_branch
      %123 = sbr.rel (%p121) target = $region85
    $region84: #{gcnn_forward.1} parent=1 // pred_region
      %v124 = vld [vmem:[%s3] sm:$0xf]
      %v125 = vld [vmem:[%s3 + $0x4] sm:$0xf]
      %v126 = vld [vmem:[%s3 + $0x8] sm:$0xf]
      %v127 = vld [vmem:[%s3 + $0xc] sm:$0xf]
      %v128 = vld [vmem:[%s3 + $0x10] sm:$0xf]
      %v129 = vld [vmem:[%s3 + $0x14] sm:$0xf]
      %v130 = vld [vmem:[%s3 + $0x18] sm:$0xf]
      %v131 = vld [vmem:[%s3 + $0x1c] sm:$0xf]
      %v132 = vld [vmem:[%s3 + $0x20] sm:$0xf]
      %v133 = vld [vmem:[%s3 + $0x24] sm:$0xf]
      %v134 = vld [vmem:[%s3 + $0x28] sm:$0xf]
      %v135 = vld [vmem:[%s3 + $0x2c] sm:$0xf]
      %v136 = vld [vmem:[%s3 + $0x30] sm:$0xf]
      %v137 = vld [vmem:[%s3 + $0x34] sm:$0xf]
      %v138 = vld [vmem:[%s3 + $0x38] sm:$0xf]
      %v139 = vld [vmem:[%s3 + $0x3c] sm:$0xf]
      %v140 = vld [vmem:[%s4] sm:$0x1]
      %v141 = vld [vmem:[%s0] sm:$0xff]
      %v142 = vld [vmem:[%s0 + $0x8] sm:$0xff]
      %v143 = vpack.c.bf16 %v141, %v141
      %v144 = vpack.c.bf16 %v142, %v142
      %v146 = vlaneseq
      %v147 = vshrl.u32 %v146, 7
      %v148 = vsub.s32 0, %v147
      %v149 = vrot.slane %v140, %v148
      %v153 = vunpack.c.l.b16 %v143
      %v154 = vunpack.c.l.b16 %v144
      %v155 = vpack.c.b16 %v154, %v153
      %v173 = vunpack.c.l.b16 %v124
      %v174 = vunpack.c.l.b16 %v125
      %v175 = vunpack.c.l.b16 %v126
      %v176 = vunpack.c.l.b16 %v127
      %v177 = vunpack.c.l.b16 %v128
      %v178 = vunpack.c.l.b16 %v129
      %v179 = vunpack.c.l.b16 %v130
      %v180 = vunpack.c.l.b16 %v131
      %v181 = vunpack.c.l.b16 %v132
      %v182 = vunpack.c.l.b16 %v133
      %v183 = vunpack.c.l.b16 %v134
      %v184 = vunpack.c.l.b16 %v135
      %v185 = vunpack.c.l.b16 %v136
      %v186 = vunpack.c.l.b16 %v137
      %v187 = vunpack.c.l.b16 %v138
      %v188 = vunpack.c.l.b16 %v139
      %v189 = vpack.c.b16 %v174, %v173
      %v190 = vpack.c.b16 %v176, %v175
      %v191 = vpack.c.b16 %v178, %v177
      %v192 = vpack.c.b16 %v180, %v179
      %v193 = vpack.c.b16 %v182, %v181
      %v194 = vpack.c.b16 %v184, %v183
      %v195 = vpack.c.b16 %v186, %v185
      %v196 = vpack.c.b16 %v188, %v187
      %205 = vmatprep.subr.bf16.mxu0 0
      %206 = vmatpush1.bf16.msra.mxu0 %v189
      %207 = vmatprep.subr.bf16.mxu0 0
      %208 = vmatpush1.bf16.msra.mxu0 %v190
      %209 = vmatprep.subr.bf16.mxu0 0
      %210 = vmatpush1.bf16.msra.mxu0 %v191
      %211 = vmatprep.subr.bf16.mxu0 0
      %212 = vmatpush1.bf16.msra.mxu0 %v192
      %213 = vmatprep.subr.bf16.mxu0 0
      %214 = vmatpush1.bf16.msra.mxu0 %v193
      %215 = vmatprep.subr.bf16.mxu0 0
      %216 = vmatpush1.bf16.msra.mxu0 %v194
      %217 = vmatprep.subr.bf16.mxu0 0
      %218 = vmatpush1.bf16.msra.mxu0 %v195
      %219 = vmatprep.subr.bf16.mxu0 0
      %220 = vmatpush1.bf16.msra.mxu0 %v196
      %221 = vmatprep.subr.bf16.mxu0 0
      %222 = vmatpush1.bf16.msra.mxu0 0
      %223 = vmatprep.subr.bf16.mxu0 0
      %224 = vmatpush1.bf16.msra.mxu0 0
      %225 = vmatprep.subr.bf16.mxu0 0
      %226 = vmatpush1.bf16.msra.mxu0 0
      %227 = vmatprep.subr.bf16.mxu0 0
      %228 = vmatpush1.bf16.msra.mxu0 0
      %229 = vmatprep.subr.bf16.mxu0 0
      %230 = vmatpush1.bf16.msra.mxu0 0
      %231 = vmatprep.subr.bf16.mxu0 0
      %232 = vmatpush1.bf16.msra.mxu0 0
      %233 = vmatprep.subr.bf16.mxu0 0
      %234 = vmatpush1.bf16.msra.mxu0 0
      %235 = vmatprep.subr.bf16.mxu0 0
      %236 = vmatpush1.bf16.msra.mxu0 0
      %237 = vmatprep.mubr.bf16.mxu0 0
      %238 = vmatmul.mubr.bf16.gmra.mrb[0].mxu0 %v155
      %v239 = vpop.f32.mrb[0].mxu0
      %v240 = vadd.f32 %v149, %v239
      %v241 = vpop.f32.mrb[0].mxu0
      %v242 = vpop.f32.mrb[0].mxu0
      %v243 = vadd.f32 %v149, %v242
      %v244 = vpop.f32.mrb[0].mxu0
      %245 = vdwg.mxu0
      %246 = vst [vmem:[#allocation3] sm:$0xff] %v240
      %247 = vst [vmem:[#allocation3 + $0x8] sm:$0xff] %v243
      %v248 = vpack.c.bf16 %v240, %v240
      %v249 = vpack.c.bf16 %v243, %v243
      %v252 = vrot.slane %v248, 4
      %v253 = vrot.slane %v249, 4
      %256 = vst [vmem:[#allocation2] sm:$0xf0] %v252
      %257 = vst [vmem:[#allocation2 + $0x8] sm:$0xf0] %v253
      %v258 = vld [vmem:[%s1] sm:$0xff]
      %v259 = vld [vmem:[%s1 + $0x8] sm:$0xff]
      %v260 = vpack.c.bf16 %v258, %v258
      %v261 = vpack.c.bf16 %v259, %v259
      %v264 = vunpack.c.l.b16 %v260
      %v265 = vunpack.c.l.b16 %v261
      %v266 = vpack.c.b16 %v265, %v264
      %268 = vmatprep.subr.bf16.mxu0 0
      %269 = vmatpush1.bf16.msra.mxu0 %v189
      %270 = vmatprep.subr.bf16.mxu0 0
      %271 = vmatpush1.bf16.msra.mxu0 %v190
      %272 = vmatprep.subr.bf16.mxu0 0
      %273 = vmatpush1.bf16.msra.mxu0 %v191
      %274 = vmatprep.subr.bf16.mxu0 0
      %275 = vmatpush1.bf16.msra.mxu0 %v192
      %276 = vmatprep.subr.bf16.mxu0 0
      %277 = vmatpush1.bf16.msra.mxu0 %v193
      %278 = vmatprep.subr.bf16.mxu0 0
      %279 = vmatpush1.bf16.msra.mxu0 %v194
      %280 = vmatprep.subr.bf16.mxu0 0
      %281 = vmatpush1.bf16.msra.mxu0 %v195
      %282 = vmatprep.subr.bf16.mxu0 0
      %283 = vmatpush1.bf16.msra.mxu0 %v196
      %284 = vmatprep.subr.bf16.mxu0 0
      %285 = vmatpush1.bf16.msra.mxu0 0
      %286 = vmatprep.subr.bf16.mxu0 0
      %287 = vmatpush1.bf16.msra.mxu0 0
      %288 = vmatprep.subr.bf16.mxu0 0
      %289 = vmatpush1.bf16.msra.mxu0 0
      %290 = vmatprep.subr.bf16.mxu0 0
      %291 = vmatpush1.bf16.msra.mxu0 0
      %292 = vmatprep.subr.bf16.mxu0 0
      %293 = vmatpush1.bf16.msra.mxu0 0
      %294 = vmatprep.subr.bf16.mxu0 0
      %295 = vmatpush1.bf16.msra.mxu0 0
      %296 = vmatprep.subr.bf16.mxu0 0
      %297 = vmatpush1.bf16.msra.mxu0 0
      %298 = vmatprep.subr.bf16.mxu0 0
      %299 = vmatpush1.bf16.msra.mxu0 0
      %300 = vmatprep.mubr.bf16.mxu0 0
      %301 = vmatmul.mubr.bf16.gmra.mrb[0].mxu0 %v266
      %v302 = vpop.f32.mrb[0].mxu0
      %v303 = vadd.f32 %v149, %v302
      %v304 = vpop.f32.mrb[0].mxu0
      %v305 = vpop.f32.mrb[0].mxu0
      %v306 = vadd.f32 %v149, %v305
      %v307 = vpop.f32.mrb[0].mxu0
      %308 = vdwg.mxu0
      %v309 = vpack.c.bf16 %v303, %v303
      %v310 = vpack.c.bf16 %v306, %v306
      %311 = vst [vmem:[#allocation2] sm:$0xf] %v309
      %312 = vst [vmem:[#allocation2 + $0x8] sm:$0xf] %v310
      %313 = vst [vmem:[#allocation4] sm:$0xff] 0.0
      %314 = vst [vmem:[#allocation4 + $0x8] sm:$0xff] 0.0
    $region85: #{gcnn_forward.1} parent=1 // pred_fallthru
      _
    %v315 = vld [vmem:[#allocation5 + $0x8] sm:$0xff]
    %v316 = vld [vmem:[#allocation5 + $0x18] sm:$0xff]
    %v317 = vpack.c.bf16 %v315, %v315
    %v318 = vpack.c.bf16 %v316, %v316
    %v319 = vld [vmem:[#allocation2] sm:$0xff]
    %v320 = vld [vmem:[#allocation2 + $0x8] sm:$0xff]
    %v321 = vld [vmem:[#allocation4] sm:$0xff]
    %v322 = vld [vmem:[#allocation4 + $0x8] sm:$0xff]
    %vm323 = vcmask 130048
    %v325 = vsel %vm323, %v317, 0
    %327 = vmatprep.subr.bf16.mxu0 0
    %328 = vmatpush1.bf16.msra.mxu0 %v319
    %329 = vmatprep.subr.bf16.mxu0 0
    %330 = vmatpush1.bf16.msra.mxu0 0
    %331 = vmatprep.subr.bf16.mxu0 0
    %332 = vmatpush1.bf16.msra.mxu0 0
    %333 = vmatprep.subr.bf16.mxu0 0
    %334 = vmatpush1.bf16.msra.mxu0 0
    %335 = vmatprep.subr.bf16.mxu0 0
    %336 = vmatpush1.bf16.msra.mxu0 0
    %337 = vmatprep.subr.bf16.mxu0 0
    %338 = vmatpush1.bf16.msra.mxu0 0
    %339 = vmatprep.subr.bf16.mxu0 0
    %340 = vmatpush1.bf16.msra.mxu0 0
    %341 = vmatprep.subr.bf16.mxu0 0
    %342 = vmatpush1.bf16.msra.mxu0 0
    %343 = vmatprep.subr.bf16.mxu0 0
    %344 = vmatpush1.bf16.msra.mxu0 0
    %345 = vmatprep.subr.bf16.mxu0 0
    %346 = vmatpush1.bf16.msra.mxu0 0
    %347 = vmatprep.subr.bf16.mxu0 0
    %348 = vmatpush1.bf16.msra.mxu0 0
    %349 = vmatprep.subr.bf16.mxu0 0
    %350 = vmatpush1.bf16.msra.mxu0 0
    %351 = vmatprep.subr.bf16.mxu0 0
    %352 = vmatpush1.bf16.msra.mxu0 0
    %353 = vmatprep.subr.bf16.mxu0 0
    %354 = vmatpush1.bf16.msra.mxu0 0
    %355 = vmatprep.subr.bf16.mxu0 0
    %356 = vmatpush1.bf16.msra.mxu0 0
    %357 = vmatprep.subr.bf16.mxu0 0
    %358 = vmatpush1.bf16.msra.mxu0 0
    %359 = vmatprep.mubr.bf16.mxu0 0
    %360 = vmatmul.mubr.bf16.gmra.mrb[0].mxu0 %v325
    %v361 = vpop.f32.mrb[0].mxu0
    %v362 = vadd.f32 0.0, %v361
    %v363 = vpop.f32.mrb[0].mxu0
    %v364 = vpop.f32.mrb[0].mxu0
    %v365 = vpop.f32.mrb[0].mxu0
    %366 = vdwg.mxu0
    %v368 = vsel %vm323, %v318, 0
    %370 = vmatprep.subr.bf16.mxu0 0
    %371 = vmatpush1.bf16.msra.mxu0 %v320
    %372 = vmatprep.subr.bf16.mxu0 0
    %373 = vmatpush1.bf16.msra.mxu0 0
    %374 = vmatprep.subr.bf16.mxu0 0
    %375 = vmatpush1.bf16.msra.mxu0 0
    %376 = vmatprep.subr.bf16.mxu0 0
    %377 = vmatpush1.bf16.msra.mxu0 0
    %378 = vmatprep.subr.bf16.mxu0 0
    %379 = vmatpush1.bf16.msra.mxu0 0
    %380 = vmatprep.subr.bf16.mxu0 0
    %381 = vmatpush1.bf16.msra.mxu0 0
    %382 = vmatprep.subr.bf16.mxu0 0
    %383 = vmatpush1.bf16.msra.mxu0 0
    %384 = vmatprep.subr.bf16.mxu0 0
    %385 = vmatpush1.bf16.msra.mxu0 0
    %386 = vmatprep.subr.bf16.mxu0 0
    %387 = vmatpush1.bf16.msra.mxu0 0
    %388 = vmatprep.subr.bf16.mxu0 0
    %389 = vmatpush1.bf16.msra.mxu0 0
    %390 = vmatprep.subr.bf16.mxu0 0
    %391 = vmatpush1.bf16.msra.mxu0 0
    %392 = vmatprep.subr.bf16.mxu0 0
    %393 = vmatpush1.bf16.msra.mxu0 0
    %394 = vmatprep.subr.bf16.mxu0 0
    %395 = vmatpush1.bf16.msra.mxu0 0
    %396 = vmatprep.subr.bf16.mxu0 0
    %397 = vmatpush1.bf16.msra.mxu0 0
    %398 = vmatprep.subr.bf16.mxu0 0
    %399 = vmatpush1.bf16.msra.mxu0 0
    %400 = vmatprep.subr.bf16.mxu0 0
    %401 = vmatpush1.bf16.msra.mxu0 0
    %402 = vmatprep.mubr.bf16.mxu0 0
    %403 = vmatmul.mubr.bf16.gmra.mrb[0].mxu0 %v368
    %v404 = vpop.f32.mrb[0].mxu0
    %v405 = vadd.f32 0.0, %v404
    %v406 = vpop.f32.mrb[0].mxu0
    %v407 = vpop.f32.mrb[0].mxu0
    %v408 = vpop.f32.mrb[0].mxu0
    %409 = vdwg.mxu0
    %v410 = vadd.f32 %v321, %v362
    %v411 = vadd.f32 %v322, %v405
    %412 = vst [vmem:[#allocation4] sm:$0xff] %v410
    %413 = vst [vmem:[#allocation4 + $0x8] sm:$0xff] %v411
    // Predicated region
    $region86: #{gcnn_forward.1} parent=1 // pred_check
      %p414 = pneg %p120
    $region87: #{gcnn_forward.1} parent=1 // pred_check_branch
      %416 = sbr.rel (%p414) target = $region89
    $region88: #{gcnn_forward.1} parent=1 // pred_region
      %v417 = vld [vmem:[#allocation3] sm:$0xff]
      %v418 = vld [vmem:[#allocation3 + $0x8] sm:$0xff]
      %v419 = vld [vmem:[#allocation4] sm:$0xff]
      %v420 = vld [vmem:[#allocation4 + $0x8] sm:$0xff]
      %421 = vadd.xlane.f32.xlu0 %v417
      %v422 = vpop.xlane.xlu0 %421
      %423 = vadd.xlane.f32.xlu0 %v418
      %v424 = vpop.xlane.xlu0 %423
      %v425 = vmul.f32 %v422, 0.03125
      %v426 = vmul.f32 %v424, 0.03125
      %v427 = vsub.f32 %v417, %v425
      %v428 = vsub.f32 %v418, %v426
      %v429 = vlaneseq
      %v430 = vand.u32 %v429, 127
      %vm431 = vcmp.lt.s32.totalorder %v430, 32
      %v432 = vsel %vm431, 1, 0
      %vm433 = vcmp.eq.s32.totalorder %v432, 1
      %v434 = vsel %vm433, %v427, 0.0
      %v435 = vsel %vm433, %v428, 0.0
      %v436 = vmul.f32 %v434, %v434
      %v437 = vmul.f32 %v435, %v435
      %438 = vadd.xlane.f32.xlu0 %v436
      %v439 = vpop.xlane.xlu0 %438
      %440 = vadd.xlane.f32.xlu0 %v437
      %v441 = vpop.xlane.xlu0 %440
      %v442 = vmul.f32 %v439, 0.032258064
      %v443 = vmul.f32 %v441, 0.032258064
      %v444 = vrsqrt.pop %v442
      %v445 = vmul.f32 %v442, %v444
      %vm446 = vcmp.eq.f32.partialorder %v442, inf
      %v447 = vsel %vm446, %v442, %v445
      %vm448 = vcmp.eq.f32.partialorder %v442, 0.0
      %v449 = vand.u32 %v442, 2147483648
      %v450 = vsel %vm448, %v449, %v447
      %v451 = vrsqrt.pop %v443
      %v452 = vmul.f32 %v443, %v451
      %vm453 = vcmp.eq.f32.partialorder %v443, inf
      %v454 = vsel %vm453, %v443, %v452
      %vm455 = vcmp.eq.f32.partialorder %v443, 0.0
      %v456 = vand.u32 %v443, 2147483648
      %v457 = vsel %vm455, %v456, %v454
      %v458 = vadd.f32 %v450, 1e-06
      %v459 = vadd.f32 %v457, 1e-06
      %v460 = vrcp.pop %v458
      %v461 = vmul.f32 1.0, %v460
      %v462 = vrcp.pop %v459
      %v463 = vmul.f32 1.0, %v462
      %v464 = vld [vmem:[%s11] sm:$0x1]
      %v465 = vmul.f32 %v434, %v461
      %v466 = vmul.f32 %v435, %v463
      %v468 = vlaneseq
      %v469 = vshrl.u32 %v468, 7
      %v470 = vsub.s32 0, %v469
      %v471 = vrot.slane %v464, %v470
      %v473 = vmul.f32 %v471, %v465
      %v474 = vmul.f32 %v471, %v466
      %v475 = vld [vmem:[%s12] sm:$0x1]
      %v477 = vlaneseq
      %v478 = vshrl.u32 %v477, 7
      %v479 = vsub.s32 0, %v478
      %v480 = vrot.slane %v475, %v479
      %v482 = vadd.f32 %v473, %v480
      %v483 = vadd.f32 %v474, %v480
      %v484 = vpack.c.bf16 %v483, %v482
      %v485 = vld [vmem:[#allocation8] sm:$0xff]
      %v486 = vld [vmem:[#allocation8 + $0x8] sm:$0xff]
      %v487 = vld [vmem:[#allocation8 + $0x10] sm:$0xff]
      %v488 = vld [vmem:[#allocation8 + $0x18] sm:$0xff]
      %v489 = vld [vmem:[#allocation8 + $0x20] sm:$0xff]
      %v490 = vld [vmem:[#allocation8 + $0x28] sm:$0xff]
      %v491 = vld [vmem:[#allocation8 + $0x30] sm:$0xff]
      %v492 = vld [vmem:[#allocation8 + $0x38] sm:$0xff]
      %v493 = vld [vmem:[#allocation8 + $0x40] sm:$0xff]
      %v494 = vld [vmem:[#allocation8 + $0x48] sm:$0xff]
      %v495 = vld [vmem:[#allocation8 + $0x50] sm:$0xff]
      %v496 = vld [vmem:[#allocation8 + $0x58] sm:$0xff]
      %v497 = vld [vmem:[#allocation8 + $0x60] sm:$0xff]
      %v498 = vld [vmem:[#allocation8 + $0x68] sm:$0xff]
      %v499 = vld [vmem:[#allocation8 + $0x70] sm:$0xff]
      %v500 = vld [vmem:[#allocation8 + $0x78] sm:$0xff]
      %v501 = vld [vmem:[%s6] sm:$0x3]
      %v503 = vlaneseq
      %v504 = vshrl.u32 %v503, 7
      %v505 = vsub.s32 0, %v504
      %v506 = vrot.slane %v501, %v505
      %v507 = vlaneseq
      %v508 = vshrl.u32 %v507, 7
      %v509 = vsub.s32 1, %v508
      %v510 = vrot.slane %v501, %v509
      %v529 = vunpack.c.l.b16 %v485
      %v530 = vunpack.c.h.b16 %v485
      %v531 = vunpack.c.l.b16 %v486
      %v532 = vunpack.c.h.b16 %v486
      %v533 = vunpack.c.l.b16 %v487
      %v534 = vunpack.c.h.b16 %v487
      %v535 = vunpack.c.l.b16 %v488
      %v536 = vunpack.c.h.b16 %v488
      %v537 = vunpack.c.l.b16 %v489
      %v538 = vunpack.c.h.b16 %v489
      %v539 = vunpack.c.l.b16 %v490
      %v540 = vunpack.c.h.b16 %v490
      %v541 = vunpack.c.l.b16 %v491
      %v542 = vunpack.c.h.b16 %v491
      %v543 = vunpack.c.l.b16 %v492
      %v544 = vunpack.c.h.b16 %v492
      %v545 = vunpack.c.l.b16 %v493
      %v546 = vunpack.c.h.b16 %v493
      %v547 = vunpack.c.l.b16 %v494
      %v548 = vunpack.c.h.b16 %v494
      %v549 = vunpack.c.l.b16 %v495
      %v550 = vunpack.c.h.b16 %v495
      %v551 = vunpack.c.l.b16 %v496
      %v552 = vunpack.c.h.b16 %v496
      %v553 = vunpack.c.l.b16 %v497
      %v554 = vunpack.c.h.b16 %v497
      %v555 = vunpack.c.l.b16 %v498
      %v556 = vunpack.c.h.b16 %v498
      %v557 = vunpack.c.l.b16 %v499
      %v558 = vunpack.c.h.b16 %v499
      %v559 = vunpack.c.l.b16 %v500
      %v560 = vunpack.c.h.b16 %v500
      %v561 = vpack.c.b16 %v531, %v529
      %v562 = vpack.c.b16 %v532, %v530
      %v563 = vpack.c.b16 %v535, %v533
      %v564 = vpack.c.b16 %v536, %v534
      %v565 = vpack.c.b16 %v539, %v537
      %v566 = vpack.c.b16 %v540, %v538
      %v567 = vpack.c.b16 %v543, %v541
      %v568 = vpack.c.b16 %v544, %v542
      %v569 = vpack.c.b16 %v547, %v545
      %v570 = vpack.c.b16 %v548, %v546
      %v571 = vpack.c.b16 %v551, %v549
      %v572 = vpack.c.b16 %v552, %v550
      %v573 = vpack.c.b16 %v555, %v553
      %v574 = vpack.c.b16 %v556, %v554
      %v575 = vpack.c.b16 %v559, %v557
      %v576 = vpack.c.b16 %v560, %v558
      %593 = vmatprep.subr.bf16.mxu0 %v562
      %594 = vmatpush1.bf16.msra.mxu0 %v561
      %595 = vmatprep.subr.bf16.mxu0 %v564
      %596 = vmatpush1.bf16.msra.mxu0 %v563
      %597 = vmatprep.subr.bf16.mxu0 %v566
      %598 = vmatpush1.bf16.msra.mxu0 %v565
      %599 = vmatprep.subr.bf16.mxu0 %v568
      %600 = vmatpush1.bf16.msra.mxu0 %v567
      %601 = vmatprep.subr.bf16.mxu0 %v570
      %602 = vmatpush1.bf16.msra.mxu0 %v569
      %603 = vmatprep.subr.bf16.mxu0 %v572
      %604 = vmatpush1.bf16.msra.mxu0 %v571
      %605 = vmatprep.subr.bf16.mxu0 %v574
      %606 = vmatpush1.bf16.msra.mxu0 %v573
      %607 = vmatprep.subr.bf16.mxu0 %v576
      %608 = vmatpush1.bf16.msra.mxu0 %v575
      %609 = vmatprep.subr.bf16.mxu0 0
      %610 = vmatpush1.bf16.msra.mxu0 0
      %611 = vmatprep.subr.bf16.mxu0 0
      %612 = vmatpush1.bf16.msra.mxu0 0
      %613 = vmatprep.subr.bf16.mxu0 0
      %614 = vmatpush1.bf16.msra.mxu0 0
      %615 = vmatprep.subr.bf16.mxu0 0
      %616 = vmatpush1.bf16.msra.mxu0 0
      %617 = vmatprep.subr.bf16.mxu0 0
      %618 = vmatpush1.bf16.msra.mxu0 0
      %619 = vmatprep.subr.bf16.mxu0 0
      %620 = vmatpush1.bf16.msra.mxu0 0
      %621 = vmatprep.subr.bf16.mxu0 0
      %622 = vmatpush1.bf16.msra.mxu0 0
      %623 = vmatprep.subr.bf16.mxu0 0
      %624 = vmatpush1.bf16.msra.mxu0 0
      %625 = vmatprep.mubr.bf16.mxu0 0
      %626 = vmatmul.mubr.bf16.gmra.mrb[0].mxu0 %v484
      %v627 = vpop.f32.mrb[0].mxu0
      %v628 = vadd.f32 %v506, %v627
      %v629 = vpop.f32.mrb[0].mxu0
      %v630 = vadd.f32 %v510, %v629
      %v631 = vpop.f32.mrb[0].mxu0
      %v632 = vadd.f32 %v506, %v631
      %v633 = vpop.f32.mrb[0].mxu0
      %v634 = vadd.f32 %v510, %v633
      %635 = vdwg.mxu0
      %v636 = vpack.c.bf16 %v420, %v419
      %v637 = vld [vmem:[#allocation10] sm:$0xf]
      %v638 = vld [vmem:[#allocation10 + $0x4] sm:$0xf]
      %v639 = vld [vmem:[#allocation10 + $0x8] sm:$0xf]
      %v640 = vld [vmem:[#allocation10 + $0xc] sm:$0xf]
      %v641 = vld [vmem:[#allocation10 + $0x10] sm:$0xf]
      %v642 = vld [vmem:[#allocation10 + $0x14] sm:$0xf]
      %v643 = vld [vmem:[#allocation10 + $0x18] sm:$0xf]
      %v644 = vld [vmem:[#allocation10 + $0x1c] sm:$0xf]
      %v645 = vld [vmem:[#allocation10 + $0x20] sm:$0xf]
      %v646 = vld [vmem:[#allocation10 + $0x24] sm:$0xf]
      %v647 = vld [vmem:[#allocation10 + $0x28] sm:$0xf]
      %v648 = vld [vmem:[#allocation10 + $0x2c] sm:$0xf]
      %v649 = vld [vmem:[#allocation10 + $0x30] sm:$0xf]
      %v650 = vld [vmem:[#allocation10 + $0x34] sm:$0xf]
      %v651 = vld [vmem:[#allocation10 + $0x38] sm:$0xf]
      %v652 = vld [vmem:[#allocation10 + $0x3c] sm:$0xf]
      %v653 = vld [vmem:[%s8] sm:$0x1]
      %v655 = vlaneseq
      %v656 = vshrl.u32 %v655, 7
      %v657 = vsub.s32 0, %v656
      %v658 = vrot.slane %v653, %v657
      %v676 = vunpack.c.l.b16 %v637
      %v677 = vunpack.c.l.b16 %v638
      %v678 = vunpack.c.l.b16 %v639
      %v679 = vunpack.c.l.b16 %v640
      %v680 = vunpack.c.l.b16 %v641
      %v681 = vunpack.c.l.b16 %v642
      %v682 = vunpack.c.l.b16 %v643
      %v683 = vunpack.c.l.b16 %v644
      %v684 = vunpack.c.l.b16 %v645
      %v685 = vunpack.c.l.b16 %v646
      %v686 = vunpack.c.l.b16 %v647
      %v687 = vunpack.c.l.b16 %v648
      %v688 = vunpack.c.l.b16 %v649
      %v689 = vunpack.c.l.b16 %v650
      %v690 = vunpack.c.l.b16 %v651
      %v691 = vunpack.c.l.b16 %v652
      %v692 = vpack.c.b16 %v677, %v676
      %v693 = vpack.c.b16 %v679, %v678
      %v694 = vpack.c.b16 %v681, %v680
      %v695 = vpack.c.b16 %v683, %v682
      %v696 = vpack.c.b16 %v685, %v684
      %v697 = vpack.c.b16 %v687, %v686
      %v698 = vpack.c.b16 %v689, %v688
      %v699 = vpack.c.b16 %v691, %v690
      %708 = vmatprep.subr.bf16.mxu0 0
      %709 = vmatpush1.bf16.msra.mxu0 %v692
      %710 = vmatprep.subr.bf16.mxu0 0
      %711 = vmatpush1.bf16.msra.mxu0 %v693
      %712 = vmatprep.subr.bf16.mxu0 0
      %713 = vmatpush1.bf16.msra.mxu0 %v694
      %714 = vmatprep.subr.bf16.mxu0 0
      %715 = vmatpush1.bf16.msra.mxu0 %v695
      %716 = vmatprep.subr.bf16.mxu0 0
      %717 = vmatpush1.bf16.msra.mxu0 %v696
      %718 = vmatprep.subr.bf16.mxu0 0
      %719 = vmatpush1.bf16.msra.mxu0 %v697
      %720 = vmatprep.subr.bf16.mxu0 0
      %721 = vmatpush1.bf16.msra.mxu0 %v698
      %722 = vmatprep.subr.bf16.mxu0 0
      %723 = vmatpush1.bf16.msra.mxu0 %v699
      %724 = vmatprep.subr.bf16.mxu0 0
      %725 = vmatpush1.bf16.msra.mxu0 0
      %726 = vmatprep.subr.bf16.mxu0 0
      %727 = vmatpush1.bf16.msra.mxu0 0
      %728 = vmatprep.subr.bf16.mxu0 0
      %729 = vmatpush1.bf16.msra.mxu0 0
      %730 = vmatprep.subr.bf16.mxu0 0
      %731 = vmatpush1.bf16.msra.mxu0 0
      %732 = vmatprep.subr.bf16.mxu0 0
      %733 = vmatpush1.bf16.msra.mxu0 0
      %734 = vmatprep.subr.bf16.mxu0 0
      %735 = vmatpush1.bf16.msra.mxu0 0
      %736 = vmatprep.subr.bf16.mxu0 0
      %737 = vmatpush1.bf16.msra.mxu0 0
      %738 = vmatprep.subr.bf16.mxu0 0
      %739 = vmatpush1.bf16.msra.mxu0 0
      %740 = vmatprep.mubr.bf16.mxu0 0
      %741 = vmatmul.mubr.bf16.gmra.mrb[0].mxu0 %v636
      %v742 = vpop.f32.mrb[0].mxu0
      %v743 = vadd.f32 %v658, %v742
      %v744 = vpop.f32.mrb[0].mxu0
      %v745 = vpop.f32.mrb[0].mxu0
      %v746 = vadd.f32 %v658, %v745
      %v747 = vpop.f32.mrb[0].mxu0
      %748 = vdwg.mxu0
      %v749 = vmax.f32 %v628, %v630
      %v750 = vmax.f32 %v632, %v634
      %v751 = vmax.f32 %v749, %v743
      %v752 = vmax.f32 %v750, %v746
      %v753 = vsub.f32 %v628, %v751
      %v754 = vsub.f32 %v632, %v752
      %v755 = vmul.f32 %v753, 1.442695
      %v756 = vpow.pop %v755
      %v757 = vmul.f32 %v754, 1.442695
      %v758 = vpow.pop %v757
      %v759 = vsub.f32 %v630, %v751
      %v760 = vsub.f32 %v634, %v752
      %v761 = vmul.f32 %v759, 1.442695
      %v762 = vpow.pop %v761
      %v763 = vmul.f32 %v760, 1.442695
      %v764 = vpow.pop %v763
      %v765 = vsub.f32 %v743, %v751
      %v766 = vsub.f32 %v746, %v752
      %v767 = vmul.f32 %v765, 1.442695
      %v768 = vpow.pop %v767
      %v769 = vmul.f32 %v766, 1.442695
      %v770 = vpow.pop %v769
      %v771 = vmul.f32 %v756, %v628
      %v772 = vmul.f32 %v758, %v632
      %v773 = vmul.f32 %v762, %v630
      %v774 = vmul.f32 %v764, %v634
      %v775 = vadd.f32 %v771, %v773
      %v776 = vadd.f32 %v772, %v774
      %v777 = vmul.f32 %v768, %v743
      %v778 = vmul.f32 %v770, %v746
      %v779 = vadd.f32 %v775, %v777
      %v780 = vadd.f32 %v776, %v778
      %v781 = vadd.f32 %v756, %v762
      %v782 = vadd.f32 %v758, %v764
      %v783 = vadd.f32 %v781, %v768
      %v784 = vadd.f32 %v782, %v770
      %v785 = vrcp.pop %v783
      %v786 = vrcp.pop %v784
      %v787 = vmul.f32 %v779, %v785
      %v788 = vmul.f32 %v780, %v786
      %v789 = vpack.c.bf16 %v788, %v787
      %v790 = vld [vmem:[#allocation11] sm:$0xf]
      %v791 = vld [vmem:[#allocation11 + $0x4] sm:$0xf]
      %v792 = vld [vmem:[#allocation11 + $0x8] sm:$0xf]
      %v793 = vld [vmem:[#allocation11 + $0xc] sm:$0xf]
      %v794 = vld [vmem:[#allocation11 + $0x10] sm:$0xf]
      %v795 = vld [vmem:[#allocation11 + $0x14] sm:$0xf]
      %v796 = vld [vmem:[#allocation11 + $0x18] sm:$0xf]
      %v797 = vld [vmem:[#allocation11 + $0x1c] sm:$0xf]
      %v798 = vld [vmem:[#allocation11 + $0x20] sm:$0xf]
      %v799 = vld [vmem:[#allocation11 + $0x24] sm:$0xf]
      %v800 = vld [vmem:[#allocation11 + $0x28] sm:$0xf]
      %v801 = vld [vmem:[#allocation11 + $0x2c] sm:$0xf]
      %v802 = vld [vmem:[#allocation11 + $0x30] sm:$0xf]
      %v803 = vld [vmem:[#allocation11 + $0x34] sm:$0xf]
      %v804 = vld [vmem:[#allocation11 + $0x38] sm:$0xf]
      %v805 = vld [vmem:[#allocation11 + $0x3c] sm:$0xf]
      %v806 = vld [vmem:[%s10] sm:$0x1]
      %v808 = vlaneseq
      %v809 = vshrl.u32 %v808, 7
      %v810 = vsub.s32 0, %v809
      %v811 = vrot.slane %v806, %v810
      %v829 = vunpack.c.l.b16 %v790
      %v830 = vunpack.c.l.b16 %v791
      %v831 = vunpack.c.l.b16 %v792
      %v832 = vunpack.c.l.b16 %v793
      %v833 = vunpack.c.l.b16 %v794
      %v834 = vunpack.c.l.b16 %v795
      %v835 = vunpack.c.l.b16 %v796
      %v836 = vunpack.c.l.b16 %v797
      %v837 = vunpack.c.l.b16 %v798
      %v838 = vunpack.c.l.b16 %v799
      %v839 = vunpack.c.l.b16 %v800
      %v840 = vunpack.c.l.b16 %v801
      %v841 = vunpack.c.l.b16 %v802
      %v842 = vunpack.c.l.b16 %v803
      %v843 = vunpack.c.l.b16 %v804
      %v844 = vunpack.c.l.b16 %v805
      %v845 = vpack.c.b16 %v830, %v829
      %v846 = vpack.c.b16 %v832, %v831
      %v847 = vpack.c.b16 %v834, %v833
      %v848 = vpack.c.b16 %v836, %v835
      %v849 = vpack.c.b16 %v838, %v837
      %v850 = vpack.c.b16 %v840, %v839
      %v851 = vpack.c.b16 %v842, %v841
      %v852 = vpack.c.b16 %v844, %v843
      %861 = vmatprep.subr.bf16.mxu0 0
      %862 = vmatpush1.bf16.msra.mxu0 %v845
      %863 = vmatprep.subr.bf16.mxu0 0
      %864 = vmatpush1.bf16.msra.mxu0 %v846
      %865 = vmatprep.subr.bf16.mxu0 0
      %866 = vmatpush1.bf16.msra.mxu0 %v847
      %867 = vmatprep.subr.bf16.mxu0 0
      %868 = vmatpush1.bf16.msra.mxu0 %v848
      %869 = vmatprep.subr.bf16.mxu0 0
      %870 = vmatpush1.bf16.msra.mxu0 %v849
      %871 = vmatprep.subr.bf16.mxu0 0
      %872 = vmatpush1.bf16.msra.mxu0 %v850
      %873 = vmatprep.subr.bf16.mxu0 0
      %874 = vmatpush1.bf16.msra.mxu0 %v851
      %875 = vmatprep.subr.bf16.mxu0 0
      %876 = vmatpush1.bf16.msra.mxu0 %v852
      %877 = vmatprep.subr.bf16.mxu0 0
      %878 = vmatpush1.bf16.msra.mxu0 0
      %879 = vmatprep.subr.bf16.mxu0 0
      %880 = vmatpush1.bf16.msra.mxu0 0
      %881 = vmatprep.subr.bf16.mxu0 0
      %882 = vmatpush1.bf16.msra.mxu0 0
      %883 = vmatprep.subr.bf16.mxu0 0
      %884 = vmatpush1.bf16.msra.mxu0 0
      %885 = vmatprep.subr.bf16.mxu0 0
      %886 = vmatpush1.bf16.msra.mxu0 0
      %887 = vmatprep.subr.bf16.mxu0 0
      %888 = vmatpush1.bf16.msra.mxu0 0
      %889 = vmatprep.subr.bf16.mxu0 0
      %890 = vmatpush1.bf16.msra.mxu0 0
      %891 = vmatprep.subr.bf16.mxu0 0
      %892 = vmatpush1.bf16.msra.mxu0 0
      %893 = vmatprep.mubr.bf16.mxu0 0
      %894 = vmatmul.mubr.bf16.gmra.mrb[0].mxu0 %v789
      %v895 = vpop.f32.mrb[0].mxu0
      %v896 = vadd.f32 %v811, %v895
      %v897 = vpop.f32.mrb[0].mxu0
      %v898 = vpop.f32.mrb[0].mxu0
      %v899 = vadd.f32 %v811, %v898
      %v900 = vpop.f32.mrb[0].mxu0
      %901 = vdwg.mxu0
      %v902 = vadd.f32 %v417, %v896
      %v903 = vadd.f32 %v418, %v899
      %v904 = vpack.c.bf16 %v903, %v902
      %v905 = vld [vmem:[#allocation13] sm:$0xf]
      %v906 = vld [vmem:[#allocation13 + $0x4] sm:$0xf]
      %v907 = vld [vmem:[#allocation13 + $0x8] sm:$0xf]
      %v908 = vld [vmem:[#allocation13 + $0xc] sm:$0xf]
      %v909 = vld [vmem:[#allocation13 + $0x10] sm:$0xf]
      %v910 = vld [vmem:[#allocation13 + $0x14] sm:$0xf]
      %v911 = vld [vmem:[#allocation13 + $0x18] sm:$0xf]
      %v912 = vld [vmem:[#allocation13 + $0x1c] sm:$0xf]
      %v913 = vld [vmem:[#allocation13 + $0x20] sm:$0xf]
      %v914 = vld [vmem:[#allocation13 + $0x24] sm:$0xf]
      %v915 = vld [vmem:[#allocation13 + $0x28] sm:$0xf]
      %v916 = vld [vmem:[#allocation13 + $0x2c] sm:$0xf]
      %v917 = vld [vmem:[#allocation13 + $0x30] sm:$0xf]
      %v918 = vld [vmem:[#allocation13 + $0x34] sm:$0xf]
      %v919 = vld [vmem:[#allocation13 + $0x38] sm:$0xf]
      %v920 = vld [vmem:[#allocation13 + $0x3c] sm:$0xf]
      %v921 = vld [vmem:[%s14] sm:$0x1]
      %v923 = vlaneseq
      %v924 = vshrl.u32 %v923, 7
      %v925 = vsub.s32 0, %v924
      %v926 = vrot.slane %v921, %v925
      %v944 = vunpack.c.l.b16 %v905
      %v945 = vunpack.c.l.b16 %v906
      %v946 = vunpack.c.l.b16 %v907
      %v947 = vunpack.c.l.b16 %v908
      %v948 = vunpack.c.l.b16 %v909
      %v949 = vunpack.c.l.b16 %v910
      %v950 = vunpack.c.l.b16 %v911
      %v951 = vunpack.c.l.b16 %v912
      %v952 = vunpack.c.l.b16 %v913
      %v953 = vunpack.c.l.b16 %v914
      %v954 = vunpack.c.l.b16 %v915
      %v955 = vunpack.c.l.b16 %v916
      %v956 = vunpack.c.l.b16 %v917
      %v957 = vunpack.c.l.b16 %v918
      %v958 = vunpack.c.l.b16 %v919
      %v959 = vunpack.c.l.b16 %v920
      %v960 = vpack.c.b16 %v945, %v944
      %v961 = vpack.c.b16 %v947, %v946
      %v962 = vpack.c.b16 %v949, %v948
      %v963 = vpack.c.b16 %v951, %v950
      %v964 = vpack.c.b16 %v953, %v952
      %v965 = vpack.c.b16 %v955, %v954
      %v966 = vpack.c.b16 %v957, %v956
      %v967 = vpack.c.b16 %v959, %v958
      %976 = vmatprep.subr.bf16.mxu0 0
      %977 = vmatpush1.bf16.msra.mxu0 %v960
      %978 = vmatprep.subr.bf16.mxu0 0
      %979 = vmatpush1.bf16.msra.mxu0 %v961
      %980 = vmatprep.subr.bf16.mxu0 0
      %981 = vmatpush1.bf16.msra.mxu0 %v962
      %982 = vmatprep.subr.bf16.mxu0 0
      %983 = vmatpush1.bf16.msra.mxu0 %v963
      %984 = vmatprep.subr.bf16.mxu0 0
      %985 = vmatpush1.bf16.msra.mxu0 %v964
      %986 = vmatprep.subr.bf16.mxu0 0
      %987 = vmatpush1.bf16.msra.mxu0 %v965
      %988 = vmatprep.subr.bf16.mxu0 0
      %989 = vmatpush1.bf16.msra.mxu0 %v966
      %990 = vmatprep.subr.bf16.mxu0 0
      %991 = vmatpush1.bf16.msra.mxu0 %v967
      %992 = vmatprep.subr.bf16.mxu0 0
      %993 = vmatpush1.bf16.msra.mxu0 0
      %994 = vmatprep.subr.bf16.mxu0 0
      %995 = vmatpush1.bf16.msra.mxu0 0
      %996 = vmatprep.subr.bf16.mxu0 0
      %997 = vmatpush1.bf16.msra.mxu0 0
      %998 = vmatprep.subr.bf16.mxu0 0
      %999 = vmatpush1.bf16.msra.mxu0 0
      %1000 = vmatprep.subr.bf16.mxu0 0
      %1001 = vmatpush1.bf16.msra.mxu0 0
      %1002 = vmatprep.subr.bf16.mxu0 0
      %1003 = vmatpush1.bf16.msra.mxu0 0
      %1004 = vmatprep.subr.bf16.mxu0 0
      %1005 = vmatpush1.bf16.msra.mxu0 0
      %1006 = vmatprep.subr.bf16.mxu0 0
      %1007 = vmatpush1.bf16.msra.mxu0 0
      %1008 = vmatprep.mubr.bf16.mxu0 0
      %1009 = vmatmul.mubr.bf16.gmra.mrb[0].mxu0 %v904
      %v1010 = vpop.f32.mrb[0].mxu0
      %v1011 = vadd.f32 %v926, %v1010
      %v1012 = vpop.f32.mrb[0].mxu0
      %v1013 = vpop.f32.mrb[0].mxu0
      %v1014 = vadd.f32 %v926, %v1013
      %v1015 = vpop.f32.mrb[0].mxu0
      %1016 = vdwg.mxu0
      %1017 = vst [vmem:[#allocation14] sm:$0xff] %v1011
      %1018 = vst [vmem:[#allocation14 + $0x8] sm:$0xff] %v1014
    $region89: #{gcnn_forward.1} parent=1 // pred_fallthru
      _
    // Predicated region
    $region90: #{gcnn_forward.1} parent=1 // pred_check
      _
    $region91: #{gcnn_forward.1} parent=1 // pred_check_branch
      %1020 = sbr.rel (0) target = $region93
    $region92: #{gcnn_forward.1} parent=1 // pred_region
      %s1022 = ssub.s32 256, 256
      %1023 = vsyncadd [#allocation7], %s1022
      %s1024 = sshll.u32 [#allocation14], 4
      %s1025 = int_to_ptr.vmem [resolvable:$true] %s1024
      %1030 = dma.vmem_to_hbm [thread:$0]  %s1025, 256, %s15, [#allocation7], 128, 128, 8
    $region93: #{gcnn_forward.1} parent=1 // pred_fallthru
      _
    // Predicated region
    $region94: #{gcnn_forward.1} parent=1 // pred_check
      _
    $region95: #{gcnn_forward.1} parent=1 // pred_check_branch
      %1032 = sbr.rel (0) target = $region97
    $region96: #{gcnn_forward.1} parent=1 // pred_region
      %1033 = dma.done [#allocation7], 256
    $region97: #{gcnn_forward.1} parent=1 // pred_fallthru
      _
    %1034 = vsyncpa [#allocation6], 1
    %1035 = vsyncpa [#allocation9], 1
    %1036 = vsyncpa [#allocation12], 1
    %1037 = vsyncpa [#allocation7], 1

</llo_original>
